<compile_context>
chip_gen: v6e
topology: v6e:2x2x1
jax: 0.10.0
libtpu: 0.0.40
codegen_flags: <defaults>
</compile_context>

<pallas_src>
import jax
import jax.numpy as jnp
from jax.experimental import pallas as pl
from jax.experimental.pallas import tpu as pltpu

# ----------------------------------------------------------------------------
# Config (stand-ins for cdpp_env.PROJECT_CFG['cost_model'] / DEVICE_FEATURE_LEN)
# ----------------------------------------------------------------------------
DEVICE_FEATURE_LEN = 16
EMBED_FEATURE_LEN = 32
HIDDEN = 128
BN_EPS = 1e-5

# Row offsets of each weight matrix inside the packed bf16 slab.
# All offsets are multiples of 16 (bf16 sublane tile), so the static slices
# land on tile boundaries.
_W0_OFF = 0
_W1_OFF = _W0_OFF + DEVICE_FEATURE_LEN   # 16
_W2_OFF = _W1_OFF + HIDDEN               # 144
_W3_OFF = _W2_OFF + HIDDEN               # 272
_W_ROWS = _W3_OFF + HIDDEN               # 400


def _batch_norm(x):
    """BatchNorm1d(affine=False), training mode.

    Two-pass (centered) biased variance — matches PyTorch's normalization and
    avoids the E[x^2]-mean^2 cancellation of the previous version.  Operates
    per-lane over the batch (sublane) axis; callers pass full 128-lane slabs so
    the reduction trees run lane-dense.  Zero-padded lanes normalize to 0.
    """
    mean = jnp.mean(x, axis=0, keepdims=True)
    d = x - mean
    var = jnp.mean(d * d, axis=0, keepdims=True)
    return d * jax.lax.rsqrt(var + BN_EPS)


def device_encoder_kernel(ex_ref, xd_ref, w_ref, b_ref, out_ref):
    """ex_ref [B,128] f32 (lanes 0..31 = embedded_x, rest 0),
    xd_ref [B,16] bf16, w_ref [400,128] bf16, b_ref [4,128] f32,
    out_ref [B,128] f32 (lanes 0..31 carry the result)."""
    f32 = jnp.float32
    bf16 = jnp.bfloat16

    # Static, tile-aligned slices of the packed parameter slab (single DMA).
    w0 = w_ref[_W0_OFF:_W1_OFF, :]     # [16, 128]  bf16
    w1 = w_ref[_W1_OFF:_W2_OFF, :]     # [128,128]  bf16
    w2 = w_ref[_W2_OFF:_W3_OFF, :]     # [128,128]  bf16
    w3 = w_ref[_W3_OFF:_W_ROWS, :]     # [128,128]  bf16, full lane width (cols 32.. are 0)

    # ---- MLP: bf16 operands on the MXU, f32 accumulation / bias / ReLU ----
    z = jnp.dot(xd_ref[...], w0, preferred_element_type=f32)
    z = jnp.maximum(z + b_ref[0:1, :], 0.0)

    z = jnp.dot(z.astype(bf16), w1, preferred_element_type=f32)
    z = jnp.maximum(z + b_ref[1:2, :], 0.0)

    z = jnp.dot(z.astype(bf16), w2, preferred_element_type=f32)
    z = jnp.maximum(z + b_ref[2:3, :], 0.0)

    z = jnp.dot(z.astype(bf16), w3, preferred_element_type=f32)
    z = z + b_ref[3:4, :]              # lanes 32..127 stay exactly 0 (zero-padded w3/b3)

    # ---- BatchNorm1d(affine=False) on both 128-lane slabs, then 'add' ----
    # Both slabs are lane-dense; padded lanes normalize to 0, so lanes 0..31 of
    # the sum are exactly BN(embedded_x) + BN(z_device) and the store is a full
    # unmasked 128-lane vst.  (A single fused BN over a combined slab would
    # need a cross-lane fold/roll in the tail; two full-width passes keep the
    # epilogue shuffle-free for negligible extra reduction cost.)
    out_ref[...] = (_batch_norm(ex_ref[...]) + _batch_norm(z)).astype(out_ref.dtype)


def pack_params(params):
    """(w0,b0,w1,b1,w2,b2,w3,b3) f32 -> (bf16 weight slab [400,128], f32 bias slab [4,128]).

    w3/b3 are zero-padded from 32 to 128 output columns so the final matmul,
    BatchNorm and store all run lane-dense.
    """
    w0, b0, w1, b1, w2, b2, w3, b3 = params
    pad = HIDDEN - EMBED_FEATURE_LEN
    w_slab = jnp.concatenate(
        [w0, w1, w2, jnp.pad(w3, ((0, 0), (0, pad)))], axis=0
    ).astype(jnp.bfloat16)                                   # [400, 128]
    b_slab = jnp.concatenate(
        [b0, b1, b2, jnp.pad(b3, ((0, 0), (0, pad)))], axis=0
    ).astype(jnp.float32)                                    # [4, 128]
    return w_slab, b_slab


def device_encoder_forward(embedded_x, x_device, w_slab, b_slab):
    """Whole-problem-in-VMEM single invocation (a few hundred KiB at these sizes)."""
    B, E = embedded_x.shape
    assert E == EMBED_FEATURE_LEN

    # Lane-dense input prep (layout plumbing only, no compute hoisted):
    #   * embedded_x padded to 128 lanes so BN/add/store stay unmasked.
    #   * x_device pre-cast to bf16 (smaller DMA, no in-kernel pack).
    ex_pad = jnp.pad(embedded_x.astype(jnp.float32), ((0, 0), (0, HIDDEN - E)))
    xd_bf16 = x_device.astype(jnp.bfloat16)

    vmem = pl.BlockSpec(memory_space=pltpu.MemorySpace.VMEM)
    flops = 2 * B * (DEVICE_FEATURE_LEN * HIDDEN + 3 * HIDDEN * HIDDEN) \
        + 14 * B * HIDDEN                                    # matmuls + BN/relu/add tail
    bytes_accessed = (ex_pad.size * 4 + xd_bf16.size * 2
                      + w_slab.size * 2 + b_slab.size * 4 + B * HIDDEN * 4)

    out_full = pl.pallas_call(
        device_encoder_kernel,
        out_shape=jax.ShapeDtypeStruct((B, HIDDEN), jnp.float32),
        in_specs=[vmem, vmem, vmem, vmem],
        out_specs=vmem,
        cost_estimate=pl.CostEstimate(
            flops=flops, transcendentals=2 * HIDDEN, bytes_accessed=bytes_accessed),
    )(ex_pad, xd_bf16, w_slab, b_slab)

    # Lane-dense store inside the kernel; trivial slice back to 32 features here.
    return out_full[:, :E].astype(embedded_x.dtype)


def init_params(key):
    """Deterministic parameter init for MLP([DEV_F, 128, 128, 128, EMBED])."""
    dims = [DEVICE_FEATURE_LEN, HIDDEN, HIDDEN, HIDDEN, EMBED_FEATURE_LEN]
    params = []
    for i in range(4):
        key, kw, kb = jax.random.split(key, 3)
        fan_in = dims[i]
        bound = 1.0 / jnp.sqrt(fan_in)
        w = jax.random.uniform(kw, (dims[i], dims[i + 1]), jnp.float32, -bound, bound)
        b = jax.random.uniform(kb, (1, dims[i + 1]), jnp.float32, -bound, bound)
        params += [w, b]
    return tuple(params)


def reference_forward(embedded_x, x_device, params):
    """Plain-JAX reference with the same numerics (bf16 MXU operands, f32 accumulate)."""
    w0, b0, w1, b1, w2, b2, w3, b3 = params

    def mm(a, w):
        return jnp.dot(a.astype(jnp.bfloat16), w.astype(jnp.bfloat16),
                       preferred_element_type=jnp.float32)

    z = jnp.maximum(mm(x_device, w0) + b0, 0.0)
    z = jnp.maximum(mm(z, w1) + b1, 0.0)
    z = jnp.maximum(mm(z, w2) + b2, 0.0)
    z = mm(z, w3) + b3
    return _batch_norm(embedded_x) + _batch_norm(z)


if __name__ == "__main__":
    key = jax.random.PRNGKey(0)
    k_ex, k_xd, k_p = jax.random.split(key, 3)

    # 256 rows fills the 256-row MXU on v6e/v7x (v5e's 128-row MXU is full too).
    B = 256
    embedded_x = jax.random.normal(k_ex, (B, EMBED_FEATURE_LEN), jnp.float32)
    x_device = jax.random.normal(k_xd, (B, DEVICE_FEATURE_LEN), jnp.float32)
    params = init_params(k_p)
    w_slab, b_slab = pack_params(params)

    out = device_encoder_forward(embedded_x, x_device, w_slab, b_slab)
    out = jax.block_until_ready(out)

    ref = reference_forward(embedded_x, x_device, params)
    assert out.shape == (B, EMBED_FEATURE_LEN)
    max_err = jnp.max(jnp.abs(out - ref))
    assert jnp.allclose(out, ref, atol=5e-3, rtol=5e-3), f"max abs err {max_err}"

    print("KERNEL_OK")
</pallas_src>

<mosaic_0001>
module attributes {stable_mosaic.version = 11 : i64} {
  func.func @device_encoder_kernel(%arg0: memref<256x128xf32, #tpu.memory_space<vmem>>, %arg1: memref<256x16xbf16, #tpu.memory_space<vmem>>, %arg2: memref<400x128xbf16, #tpu.memory_space<vmem>>, %arg3: memref<4x128xf32, #tpu.memory_space<vmem>>, %arg4: memref<256x128xf32, #tpu.memory_space<vmem>>) attributes {dimension_semantics = [], scalar_prefetch = 0 : i64, scratch_operands = 0 : i64, tpu.core_type = #tpu.core_type<tc>} {
    %c0 = arith.constant 0 : index
    %c0_0 = arith.constant 0 : index
    %0 = vector.load %arg2[%c0, %c0_0] : memref<400x128xbf16, #tpu.memory_space<vmem>>, vector<16x128xbf16>
    %c16 = arith.constant 16 : index
    %c0_1 = arith.constant 0 : index
    %1 = vector.load %arg2[%c16, %c0_1] : memref<400x128xbf16, #tpu.memory_space<vmem>>, vector<128x128xbf16>
    %c144 = arith.constant 144 : index
    %c0_2 = arith.constant 0 : index
    %2 = vector.load %arg2[%c144, %c0_2] : memref<400x128xbf16, #tpu.memory_space<vmem>>, vector<128x128xbf16>
    %c272 = arith.constant 272 : index
    %c0_3 = arith.constant 0 : index
    %3 = vector.load %arg2[%c272, %c0_3] : memref<400x128xbf16, #tpu.memory_space<vmem>>, vector<128x128xbf16>
    %c0_4 = arith.constant 0 : index
    %c0_5 = arith.constant 0 : index
    %4 = vector.load %arg1[%c0_4, %c0_5] : memref<256x16xbf16, #tpu.memory_space<vmem>>, vector<256x16xbf16>
    %cst = arith.constant dense<0.000000e+00> : vector<256x128xf32>
    %5 = tpu.matmul %4, %0, %cst {dimension_numbers = #tpu.dot_dimension_numbers<[1], [0], [0], [1], [0, 0, 1, 1], [], []>} : vector<256x16xbf16>, vector<16x128xbf16>, vector<256x128xf32> -> vector<256x128xf32>
    %c0_6 = arith.constant 0 : index
    %c0_7 = arith.constant 0 : index
    %6 = vector.load %arg3[%c0_6, %c0_7] : memref<4x128xf32, #tpu.memory_space<vmem>>, vector<1x128xf32>
    %7 = vector.broadcast %6 : vector<1x128xf32> to vector<256x128xf32>
    %8 = arith.addf %5, %7 : vector<256x128xf32>
    %cst_8 = arith.constant 0.000000e+00 : f32
    %9 = vector.broadcast %cst_8 : f32 to vector<256x128xf32>
    %10 = arith.maximumf %8, %9 : vector<256x128xf32>
    %11 = arith.truncf %10 : vector<256x128xf32> to vector<256x128xbf16>
    %cst_9 = arith.constant dense<0.000000e+00> : vector<256x128xf32>
    %12 = tpu.matmul %11, %1, %cst_9 {dimension_numbers = #tpu.dot_dimension_numbers<[1], [0], [0], [1], [0, 0, 1, 1], [], []>} : vector<256x128xbf16>, vector<128x128xbf16>, vector<256x128xf32> -> vector<256x128xf32>
    %c1 = arith.constant 1 : index
    %c0_10 = arith.constant 0 : index
    %13 = vector.load %arg3[%c1, %c0_10] : memref<4x128xf32, #tpu.memory_space<vmem>>, vector<1x128xf32>
    %14 = vector.broadcast %13 : vector<1x128xf32> to vector<256x128xf32>
    %15 = arith.addf %12, %14 : vector<256x128xf32>
    %cst_11 = arith.constant 0.000000e+00 : f32
    %16 = vector.broadcast %cst_11 : f32 to vector<256x128xf32>
    %17 = arith.maximumf %15, %16 : vector<256x128xf32>
    %18 = arith.truncf %17 : vector<256x128xf32> to vector<256x128xbf16>
    %cst_12 = arith.constant dense<0.000000e+00> : vector<256x128xf32>
    %19 = tpu.matmul %18, %2, %cst_12 {dimension_numbers = #tpu.dot_dimension_numbers<[1], [0], [0], [1], [0, 0, 1, 1], [], []>} : vector<256x128xbf16>, vector<128x128xbf16>, vector<256x128xf32> -> vector<256x128xf32>
    %c2 = arith.constant 2 : index
    %c0_13 = arith.constant 0 : index
    %20 = vector.load %arg3[%c2, %c0_13] : memref<4x128xf32, #tpu.memory_space<vmem>>, vector<1x128xf32>
    %21 = vector.broadcast %20 : vector<1x128xf32> to vector<256x128xf32>
    %22 = arith.addf %19, %21 : vector<256x128xf32>
    %cst_14 = arith.constant 0.000000e+00 : f32
    %23 = vector.broadcast %cst_14 : f32 to vector<256x128xf32>
    %24 = arith.maximumf %22, %23 : vector<256x128xf32>
    %25 = arith.truncf %24 : vector<256x128xf32> to vector<256x128xbf16>
    %cst_15 = arith.constant dense<0.000000e+00> : vector<256x128xf32>
    %26 = tpu.matmul %25, %3, %cst_15 {dimension_numbers = #tpu.dot_dimension_numbers<[1], [0], [0], [1], [0, 0, 1, 1], [], []>} : vector<256x128xbf16>, vector<128x128xbf16>, vector<256x128xf32> -> vector<256x128xf32>
    %c3 = arith.constant 3 : index
    %c0_16 = arith.constant 0 : index
    %27 = vector.load %arg3[%c3, %c0_16] : memref<4x128xf32, #tpu.memory_space<vmem>>, vector<1x128xf32>
    %28 = vector.broadcast %27 : vector<1x128xf32> to vector<256x128xf32>
    %29 = arith.addf %26, %28 : vector<256x128xf32>
    %c0_17 = arith.constant 0 : index
    %c0_18 = arith.constant 0 : index
    %30 = vector.load %arg0[%c0_17, %c0_18] : memref<256x128xf32, #tpu.memory_space<vmem>>, vector<256x128xf32>
    %cst_19 = arith.constant dense<0.000000e+00> : vector<128xf32>
    %31 = vector.multi_reduction <add>, %30, %cst_19 [0] : vector<256x128xf32> to vector<128xf32>
    %32 = vector.shape_cast %31 : vector<128xf32> to vector<1x128xf32>
    %cst_20 = arith.constant 2.560000e+02 : f32
    %33 = vector.broadcast %cst_20 : f32 to vector<1x128xf32>
    %34 = arith.divf %32, %33 : vector<1x128xf32>
    %35 = vector.broadcast %34 : vector<1x128xf32> to vector<256x128xf32>
    %36 = arith.subf %30, %35 : vector<256x128xf32>
    %37 = arith.mulf %36, %36 : vector<256x128xf32>
    %cst_21 = arith.constant dense<0.000000e+00> : vector<128xf32>
    %38 = vector.multi_reduction <add>, %37, %cst_21 [0] : vector<256x128xf32> to vector<128xf32>
    %39 = vector.shape_cast %38 : vector<128xf32> to vector<1x128xf32>
    %cst_22 = arith.constant 2.560000e+02 : f32
    %40 = vector.broadcast %cst_22 : f32 to vector<1x128xf32>
    %41 = arith.divf %39, %40 : vector<1x128xf32>
    %cst_23 = arith.constant 9.99999974E-6 : f32
    %42 = vector.broadcast %cst_23 : f32 to vector<1x128xf32>
    %43 = arith.addf %41, %42 : vector<1x128xf32>
    %44 = math.rsqrt %43 : vector<1x128xf32>
    %45 = vector.broadcast %44 : vector<1x128xf32> to vector<256x128xf32>
    %46 = arith.mulf %36, %45 : vector<256x128xf32>
    %cst_24 = arith.constant dense<0.000000e+00> : vector<128xf32>
    %47 = vector.multi_reduction <add>, %29, %cst_24 [0] : vector<256x128xf32> to vector<128xf32>
    %48 = vector.shape_cast %47 : vector<128xf32> to vector<1x128xf32>
    %cst_25 = arith.constant 2.560000e+02 : f32
    %49 = vector.broadcast %cst_25 : f32 to vector<1x128xf32>
    %50 = arith.divf %48, %49 : vector<1x128xf32>
    %51 = vector.broadcast %50 : vector<1x128xf32> to vector<256x128xf32>
    %52 = arith.subf %29, %51 : vector<256x128xf32>
    %53 = arith.mulf %52, %52 : vector<256x128xf32>
    %cst_26 = arith.constant dense<0.000000e+00> : vector<128xf32>
    %54 = vector.multi_reduction <add>, %53, %cst_26 [0] : vector<256x128xf32> to vector<128xf32>
    %55 = vector.shape_cast %54 : vector<128xf32> to vector<1x128xf32>
    %cst_27 = arith.constant 2.560000e+02 : f32
    %56 = vector.broadcast %cst_27 : f32 to vector<1x128xf32>
    %57 = arith.divf %55, %56 : vector<1x128xf32>
    %cst_28 = arith.constant 9.99999974E-6 : f32
    %58 = vector.broadcast %cst_28 : f32 to vector<1x128xf32>
    %59 = arith.addf %57, %58 : vector<1x128xf32>
    %60 = math.rsqrt %59 : vector<1x128xf32>
    %61 = vector.broadcast %60 : vector<1x128xf32> to vector<256x128xf32>
    %62 = arith.mulf %52, %61 : vector<256x128xf32>
    %63 = arith.addf %46, %62 : vector<256x128xf32>
    %c0_29 = arith.constant 0 : index
    %c0_30 = arith.constant 0 : index
    %64 = vector.load %arg4[%c0_29, %c0_30] : memref<256x128xf32, #tpu.memory_space<vmem>>, vector<256x128xf32>
    tpu.vector_store %arg4[%c0_29, %c0_30], %63 {strides = array<i32>} : memref<256x128xf32, #tpu.memory_space<vmem>>, vector<256x128xf32>,
    return
  }
}

</mosaic_0001>

<llo_original>
// kernel: tpu_custom_call.1
$region0: #{tpu_custom_call.1}
  #allocation0 [shape = 'u32[]', space=smem, size = 0x4, offset = 0x4, fixed_abs, tag = 'smem constant byte address 0x4 - core index']
  #allocation1 [shape = 'u32[144,128]{1,0:T(1,128)}', space=vmem, size = 0x12000, scoped, tag = 'internal scratch']
  %s0 = inlined_call_operand.hbm [shape: f32[256,128], index: 0, kind: input, shape index: {}]
  %s1 = inlined_call_operand.vmem [shape: bf16[256,16], index: 1, kind: input, shape index: {}]
  %s2 = inlined_call_operand.hbm [shape: bf16[400,128], index: 2, kind: input, shape index: {}]
  %s3 = inlined_call_operand.vmem [shape: f32[4,128], index: 3, kind: input, shape index: {}]
  %s4 = inlined_call_operand.hbm [shape: f32[256,128], index: 4, kind: output, shape index: {}]
  %s5 = sld [smem:[#allocation0]]
  $region34: #{tpu_custom_call.1} parent=0
    _
  %s7 = ssub.s32 1, %s5
  %s8 = scalar_select 0, %s7, %s5
  $region1: #{tpu_custom_call.1} parent=0
    #allocation2 [shape = 'u8[131072]{0}', space=vmem, size = 0x20000, scoped, tag = 'input window, operand 0, single buffered']
    #allocation3 [shape = 's32[1]{0}', space=sflag, size = 0x4, scoped, tag = 'scoped memory for tpu_custom_call.1']
    #allocation4 [shape = 's32[1]{0}', space=sflag, size = 0x4, scoped, tag = 'scoped memory for tpu_custom_call.1']
    #allocation5 [shape = 'u8[102400]{0}', space=vmem, size = 0x19000, scoped, tag = 'input window, operand 2, single buffered']
    #allocation6 [shape = 's32[1]{0}', space=sflag, size = 0x4, scoped, tag = 'scoped memory for tpu_custom_call.1']
    #allocation7 [shape = 'u8[131072]{0}', space=vmem, size = 0x20000, scoped, tag = 'output window, operand 0, single buffered']
    %9 = vsyncpa [#allocation3], 0
    %10 = vsyncpa [#allocation6], 0
    %11 = vsyncpa [#allocation4], 0
    // Predicated region
    $region2: #{tpu_custom_call.1} parent=1 // pred_check
      _
    $region3: #{tpu_custom_call.1} parent=1 // pred_check_branch
      %13 = sbr.rel (0) target = $region5
    $region4: #{tpu_custom_call.1} parent=1 // pred_region
      %s15 = ssub.s32 4096, 4096
      %16 = vsyncadd [#allocation3], %s15
      %s17 = sshll.u32 [#allocation2], 4
      %s18 = int_to_ptr.vmem [resolvable:$true] %s17
      %23 = dma.hbm_to_vmem [thread:$0]  %s0, 4096, %s18, [#allocation3], 128, 128, 8
    $region5: #{tpu_custom_call.1} parent=1 // pred_fallthru
      _
    // Predicated region
    $region6: #{tpu_custom_call.1} parent=1 // pred_check
      _
    $region7: #{tpu_custom_call.1} parent=1 // pred_check_branch
      %25 = sbr.rel (0) target = $region9
    $region8: #{tpu_custom_call.1} parent=1 // pred_region
      _
    $region9: #{tpu_custom_call.1} parent=1 // pred_fallthru
      _
    // Predicated region
    $region10: #{tpu_custom_call.1} parent=1 // pred_check
      _
    $region11: #{tpu_custom_call.1} parent=1 // pred_check_branch
      %27 = sbr.rel (0) target = $region13
    $region12: #{tpu_custom_call.1} parent=1 // pred_region
      %s29 = ssub.s32 3200, 3200
      %30 = vsyncadd [#allocation6], %s29
      %s31 = sshll.u32 [#allocation5], 4
      %s32 = int_to_ptr.vmem [resolvable:$true] %s31
      %37 = dma.hbm_to_vmem [thread:$0]  %s2, 3200, %s32, [#allocation6], 64, 64, 4
    $region13: #{tpu_custom_call.1} parent=1 // pred_fallthru
      _
    // Predicated region
    $region14: #{tpu_custom_call.1} parent=1 // pred_check
      _
    $region15: #{tpu_custom_call.1} parent=1 // pred_check_branch
      %39 = sbr.rel (0) target = $region17
    $region16: #{tpu_custom_call.1} parent=1 // pred_region
      _
    $region17: #{tpu_custom_call.1} parent=1 // pred_fallthru
      _
    // Predicated region
    $region18: #{tpu_custom_call.1} parent=1 // pred_check
      _
    $region19: #{tpu_custom_call.1} parent=1 // pred_check_branch
      %41 = sbr.rel (0) target = $region21
    $region20: #{tpu_custom_call.1} parent=1 // pred_region
      %42 = dma.done [#allocation3], 4096
    $region21: #{tpu_custom_call.1} parent=1 // pred_fallthru
      _
    // Predicated region
    $region22: #{tpu_custom_call.1} parent=1 // pred_check
      _
    $region23: #{tpu_custom_call.1} parent=1 // pred_check_branch
      %44 = sbr.rel (0) target = $region25
    $region24: #{tpu_custom_call.1} parent=1 // pred_region
      %45 = dma.done [#allocation6], 3200
    $region25: #{tpu_custom_call.1} parent=1 // pred_fallthru
      _
    %v47 = vld [vmem:[#allocation5] sm:$0xf]
    %v48 = vld [vmem:[#allocation5 + $0x4] sm:$0xf]
    %v49 = vld [vmem:[#allocation5 + $0x8] sm:$0xf]
    %v50 = vld [vmem:[#allocation5 + $0xc] sm:$0xf]
    %v51 = vld [vmem:[#allocation5 + $0x10] sm:$0xf]
    %v52 = vld [vmem:[#allocation5 + $0x14] sm:$0xf]
    %v53 = vld [vmem:[#allocation5 + $0x18] sm:$0xf]
    %v54 = vld [vmem:[#allocation5 + $0x1c] sm:$0xf]
    %v55 = vld [vmem:[#allocation5 + $0x20] sm:$0xf]
    %v56 = vld [vmem:[#allocation5 + $0x24] sm:$0xf]
    %v57 = vld [vmem:[#allocation5 + $0x28] sm:$0xf]
    %v58 = vld [vmem:[#allocation5 + $0x2c] sm:$0xf]
    %v59 = vld [vmem:[#allocation5 + $0x30] sm:$0xf]
    %v60 = vld [vmem:[#allocation5 + $0x34] sm:$0xf]
    %v61 = vld [vmem:[#allocation5 + $0x38] sm:$0xf]
    %v62 = vld [vmem:[#allocation5 + $0x3c] sm:$0xf]
    %v63 = vld [vmem:[#allocation5 + $0x40] sm:$0xf]
    %v64 = vld [vmem:[#allocation5 + $0x44] sm:$0xf]
    %v65 = vld [vmem:[#allocation5 + $0x48] sm:$0xf]
    %v66 = vld [vmem:[#allocation5 + $0x4c] sm:$0xf]
    %v67 = vld [vmem:[#allocation5 + $0x50] sm:$0xf]
    %v68 = vld [vmem:[#allocation5 + $0x54] sm:$0xf]
    %v69 = vld [vmem:[#allocation5 + $0x58] sm:$0xf]
    %v70 = vld [vmem:[#allocation5 + $0x5c] sm:$0xf]
    %v71 = vld [vmem:[#allocation5 + $0x60] sm:$0xf]
    %v72 = vld [vmem:[#allocation5 + $0x64] sm:$0xf]
    %v73 = vld [vmem:[#allocation5 + $0x68] sm:$0xf]
    %v74 = vld [vmem:[#allocation5 + $0x6c] sm:$0xf]
    %v75 = vld [vmem:[#allocation5 + $0x70] sm:$0xf]
    %v76 = vld [vmem:[#allocation5 + $0x74] sm:$0xf]
    %v77 = vld [vmem:[#allocation5 + $0x78] sm:$0xf]
    %v78 = vld [vmem:[#allocation5 + $0x7c] sm:$0xf]
    %v79 = vld [vmem:[#allocation5 + $0x80] sm:$0xf]
    %v80 = vld [vmem:[#allocation5 + $0x84] sm:$0xf]
    %v81 = vld [vmem:[#allocation5 + $0x88] sm:$0xf]
    %v82 = vld [vmem:[#allocation5 + $0x8c] sm:$0xf]
    %v83 = vld [vmem:[#allocation5 + $0x90] sm:$0xf]
    %v84 = vld [vmem:[#allocation5 + $0x94] sm:$0xf]
    %v85 = vld [vmem:[#allocation5 + $0x98] sm:$0xf]
    %v86 = vld [vmem:[#allocation5 + $0x9c] sm:$0xf]
    %v87 = vld [vmem:[#allocation5 + $0xa0] sm:$0xf]
    %v88 = vld [vmem:[#allocation5 + $0xa4] sm:$0xf]
    %v89 = vld [vmem:[#allocation5 + $0xa8] sm:$0xf]
    %v90 = vld [vmem:[#allocation5 + $0xac] sm:$0xf]
    %v91 = vld [vmem:[#allocation5 + $0xb0] sm:$0xf]
    %v92 = vld [vmem:[#allocation5 + $0xb4] sm:$0xf]
    %v93 = vld [vmem:[#allocation5 + $0xb8] sm:$0xf]
    %v94 = vld [vmem:[#allocation5 + $0xbc] sm:$0xf]
    %v95 = vld [vmem:[#allocation5 + $0xc0] sm:$0xf]
    %v96 = vld [vmem:[#allocation5 + $0xc4] sm:$0xf]
    %v97 = vld [vmem:[%s1] sm:$0xf]
    %v98 = vld [vmem:[%s1 + $0x4] sm:$0xf]
    %v99 = vld [vmem:[%s1 + $0x8] sm:$0xf]
    %v100 = vld [vmem:[%s1 + $0xc] sm:$0xf]
    %v101 = vld [vmem:[%s1 + $0x10] sm:$0xf]
    %v102 = vld [vmem:[%s1 + $0x14] sm:$0xf]
    %v103 = vld [vmem:[%s1 + $0x18] sm:$0xf]
    %v104 = vld [vmem:[%s1 + $0x1c] sm:$0xf]
    %v105 = vld [vmem:[%s1 + $0x20] sm:$0xf]
    %v106 = vld [vmem:[%s1 + $0x24] sm:$0xf]
    %v107 = vld [vmem:[%s1 + $0x28] sm:$0xf]
    %v108 = vld [vmem:[%s1 + $0x2c] sm:$0xf]
    %v109 = vld [vmem:[%s1 + $0x30] sm:$0xf]
    %v110 = vld [vmem:[%s1 + $0x34] sm:$0xf]
    %v111 = vld [vmem:[%s1 + $0x38] sm:$0xf]
    %v112 = vld [vmem:[%s1 + $0x3c] sm:$0xf]
    %v113 = vld [vmem:[%s1 + $0x40] sm:$0xf]
    %v114 = vld [vmem:[%s1 + $0x44] sm:$0xf]
    %v115 = vld [vmem:[%s1 + $0x48] sm:$0xf]
    %v116 = vld [vmem:[%s1 + $0x4c] sm:$0xf]
    %v117 = vld [vmem:[%s1 + $0x50] sm:$0xf]
    %v118 = vld [vmem:[%s1 + $0x54] sm:$0xf]
    %v119 = vld [vmem:[%s1 + $0x58] sm:$0xf]
    %v120 = vld [vmem:[%s1 + $0x5c] sm:$0xf]
    %v121 = vld [vmem:[%s1 + $0x60] sm:$0xf]
    %v122 = vld [vmem:[%s1 + $0x64] sm:$0xf]
    %v123 = vld [vmem:[%s1 + $0x68] sm:$0xf]
    %v124 = vld [vmem:[%s1 + $0x6c] sm:$0xf]
    %v125 = vld [vmem:[%s1 + $0x70] sm:$0xf]
    %v126 = vld [vmem:[%s1 + $0x74] sm:$0xf]
    %v127 = vld [vmem:[%s1 + $0x78] sm:$0xf]
    %v128 = vld [vmem:[%s1 + $0x7c] sm:$0xf]
    %v129 = vld [vmem:[%s3] sm:$0x1]
    %v130 = vlaneseq
    %v131 = vshrl.u32 %v130, 7
    %v132 = vsub.s32 0, %v131
    %v133 = vrot.slane %v129, %v132
    %v166 = vunpack.c.l.b16 %v97
    %v167 = vunpack.c.l.b16 %v98
    %v168 = vunpack.c.l.b16 %v99
    %v169 = vunpack.c.l.b16 %v100
    %v170 = vunpack.c.l.b16 %v101
    %v171 = vunpack.c.l.b16 %v102
    %v172 = vunpack.c.l.b16 %v103
    %v173 = vunpack.c.l.b16 %v104
    %v174 = vunpack.c.l.b16 %v105
    %v175 = vunpack.c.l.b16 %v106
    %v176 = vunpack.c.l.b16 %v107
    %v177 = vunpack.c.l.b16 %v108
    %v178 = vunpack.c.l.b16 %v109
    %v179 = vunpack.c.l.b16 %v110
    %v180 = vunpack.c.l.b16 %v111
    %v181 = vunpack.c.l.b16 %v112
    %v182 = vunpack.c.l.b16 %v113
    %v183 = vunpack.c.l.b16 %v114
    %v184 = vunpack.c.l.b16 %v115
    %v185 = vunpack.c.l.b16 %v116
    %v186 = vunpack.c.l.b16 %v117
    %v187 = vunpack.c.l.b16 %v118
    %v188 = vunpack.c.l.b16 %v119
    %v189 = vunpack.c.l.b16 %v120
    %v190 = vunpack.c.l.b16 %v121
    %v191 = vunpack.c.l.b16 %v122
    %v192 = vunpack.c.l.b16 %v123
    %v193 = vunpack.c.l.b16 %v124
    %v194 = vunpack.c.l.b16 %v125
    %v195 = vunpack.c.l.b16 %v126
    %v196 = vunpack.c.l.b16 %v127
    %v197 = vunpack.c.l.b16 %v128
    %v198 = vpack.c.b16 %v167, %v166
    %v199 = vpack.c.b16 %v169, %v168
    %v200 = vpack.c.b16 %v171, %v170
    %v201 = vpack.c.b16 %v173, %v172
    %v202 = vpack.c.b16 %v175, %v174
    %v203 = vpack.c.b16 %v177, %v176
    %v204 = vpack.c.b16 %v179, %v178
    %v205 = vpack.c.b16 %v181, %v180
    %v206 = vpack.c.b16 %v183, %v182
    %v207 = vpack.c.b16 %v185, %v184
    %v208 = vpack.c.b16 %v187, %v186
    %v209 = vpack.c.b16 %v189, %v188
    %v210 = vpack.c.b16 %v191, %v190
    %v211 = vpack.c.b16 %v193, %v192
    %v212 = vpack.c.b16 %v195, %v194
    %v213 = vpack.c.b16 %v197, %v196
    %v216 = vunpack.c.l.b16 %v47
    %v217 = vunpack.c.l.b16 %v48
    %v218 = vpack.c.b16 %v217, %v216
    %vm220 = vcmask 130048
    %v222 = vsel %vm220, %v198, 0
    %v225 = vsel %vm220, %v199, 0
    %v228 = vsel %vm220, %v200, 0
    %v231 = vsel %vm220, %v201, 0
    %v234 = vsel %vm220, %v202, 0
    %v237 = vsel %vm220, %v203, 0
    %v240 = vsel %vm220, %v204, 0
    %v243 = vsel %vm220, %v205, 0
    %v246 = vsel %vm220, %v206, 0
    %v249 = vsel %vm220, %v207, 0
    %v252 = vsel %vm220, %v208, 0
    %v255 = vsel %vm220, %v209, 0
    %v258 = vsel %vm220, %v210, 0
    %v261 = vsel %vm220, %v211, 0
    %v264 = vsel %vm220, %v212, 0
    %v267 = vsel %vm220, %v213, 0
    %269 = vmatprep.subr.bf16.mxu0 0
    %270 = vmatpush1.bf16.msra.mxu0 0
    %271 = vmatprep.subr.bf16.mxu0 0
    %272 = vmatpush1.bf16.msra.mxu0 0
    %273 = vmatprep.subr.bf16.mxu0 0
    %274 = vmatpush1.bf16.msra.mxu0 0
    %275 = vmatprep.subr.bf16.mxu0 0
    %276 = vmatpush1.bf16.msra.mxu0 0
    %277 = vmatprep.subr.bf16.mxu0 0
    %278 = vmatpush1.bf16.msra.mxu0 0
    %279 = vmatprep.subr.bf16.mxu0 0
    %280 = vmatpush1.bf16.msra.mxu0 0
    %281 = vmatprep.subr.bf16.mxu0 0
    %282 = vmatpush1.bf16.msra.mxu0 0
    %283 = vmatprep.subr.bf16.mxu0 0
    %284 = vmatpush1.bf16.msra.mxu0 %v218
    %285 = vmatprep.subr.bf16.mxu0 0
    %286 = vmatpush2.bf16.msra.mxu0 0
    %287 = vmatprep.subr.bf16.mxu0 0
    %288 = vmatpush2.bf16.msra.mxu0 0
    %289 = vmatprep.subr.bf16.mxu0 0
    %290 = vmatpush2.bf16.msra.mxu0 0
    %291 = vmatprep.subr.bf16.mxu0 0
    %292 = vmatpush2.bf16.msra.mxu0 0
    %293 = vmatprep.subr.bf16.mxu0 0
    %294 = vmatpush2.bf16.msra.mxu0 0
    %295 = vmatprep.subr.bf16.mxu0 0
    %296 = vmatpush2.bf16.msra.mxu0 0
    %297 = vmatprep.subr.bf16.mxu0 0
    %298 = vmatpush2.bf16.msra.mxu0 0
    %299 = vmatprep.subr.bf16.mxu0 0
    %300 = vmatpush2.bf16.msra.mxu0 0
    %301 = vmatprep.mubr.bf16.mxu0 0
    %302 = vmatmul.mubr.bf16.gmra.mxu0 %v222
    %v303 = vpop.f32.mrf.mxu0
    %v304 = vadd.f32 %v133, %v303
    %v305 = vpop.f32.mrf.mxu0
    %v306 = vpop.f32.mrf.mxu0
    %v307 = vadd.f32 %v133, %v306
    %v308 = vpop.f32.mrf.mxu0
    %309 = vmatprep.mubr.bf16.mxu0 0
    %310 = vmatmul.mubr.bf16.gmra.mxu0 %v225
    %v311 = vpop.f32.mrf.mxu0
    %v312 = vadd.f32 %v133, %v311
    %v313 = vpop.f32.mrf.mxu0
    %v314 = vpop.f32.mrf.mxu0
    %v315 = vadd.f32 %v133, %v314
    %v316 = vpop.f32.mrf.mxu0
    %317 = vmatprep.mubr.bf16.mxu0 0
    %318 = vmatmul.mubr.bf16.gmra.mxu0 %v228
    %v319 = vpop.f32.mrf.mxu0
    %v320 = vadd.f32 %v133, %v319
    %v321 = vpop.f32.mrf.mxu0
    %v322 = vpop.f32.mrf.mxu0
    %v323 = vadd.f32 %v133, %v322
    %v324 = vpop.f32.mrf.mxu0
    %325 = vmatprep.mubr.bf16.mxu0 0
    %326 = vmatmul.mubr.bf16.gmra.mxu0 %v231
    %v327 = vpop.f32.mrf.mxu0
    %v328 = vadd.f32 %v133, %v327
    %v329 = vpop.f32.mrf.mxu0
    %v330 = vpop.f32.mrf.mxu0
    %v331 = vadd.f32 %v133, %v330
    %v332 = vpop.f32.mrf.mxu0
    %333 = vmatprep.mubr.bf16.mxu0 0
    %334 = vmatmul.mubr.bf16.gmra.mxu0 %v234
    %v335 = vpop.f32.mrf.mxu0
    %v336 = vadd.f32 %v133, %v335
    %v337 = vpop.f32.mrf.mxu0
    %v338 = vpop.f32.mrf.mxu0
    %v339 = vadd.f32 %v133, %v338
    %v340 = vpop.f32.mrf.mxu0
    %341 = vmatprep.mubr.bf16.mxu0 0
    %342 = vmatmul.mubr.bf16.gmra.mxu0 %v237
    %v343 = vpop.f32.mrf.mxu0
    %v344 = vadd.f32 %v133, %v343
    %v345 = vpop.f32.mrf.mxu0
    %v346 = vpop.f32.mrf.mxu0
    %v347 = vadd.f32 %v133, %v346
    %v348 = vpop.f32.mrf.mxu0
    %349 = vmatprep.mubr.bf16.mxu0 0
    %350 = vmatmul.mubr.bf16.gmra.mxu0 %v240
    %v351 = vpop.f32.mrf.mxu0
    %v352 = vadd.f32 %v133, %v351
    %v353 = vpop.f32.mrf.mxu0
    %v354 = vpop.f32.mrf.mxu0
    %v355 = vadd.f32 %v133, %v354
    %v356 = vpop.f32.mrf.mxu0
    %357 = vmatprep.mubr.bf16.mxu0 0
    %358 = vmatmul.mubr.bf16.gmra.mxu0 %v243
    %v359 = vpop.f32.mrf.mxu0
    %v360 = vadd.f32 %v133, %v359
    %v361 = vpop.f32.mrf.mxu0
    %v362 = vpop.f32.mrf.mxu0
    %v363 = vadd.f32 %v133, %v362
    %v364 = vpop.f32.mrf.mxu0
    %365 = vmatprep.mubr.bf16.mxu0 0
    %366 = vmatmul.mubr.bf16.gmra.mxu0 %v246
    %v367 = vpop.f32.mrf.mxu0
    %v368 = vadd.f32 %v133, %v367
    %v369 = vpop.f32.mrf.mxu0
    %v370 = vpop.f32.mrf.mxu0
    %v371 = vadd.f32 %v133, %v370
    %v372 = vpop.f32.mrf.mxu0
    %373 = vmatprep.mubr.bf16.mxu0 0
    %374 = vmatmul.mubr.bf16.gmra.mxu0 %v249
    %v375 = vpop.f32.mrf.mxu0
    %v376 = vadd.f32 %v133, %v375
    %v377 = vpop.f32.mrf.mxu0
    %v378 = vpop.f32.mrf.mxu0
    %v379 = vadd.f32 %v133, %v378
    %v380 = vpop.f32.mrf.mxu0
    %381 = vmatprep.mubr.bf16.mxu0 0
    %382 = vmatmul.mubr.bf16.gmra.mxu0 %v252
    %v383 = vpop.f32.mrf.mxu0
    %v384 = vadd.f32 %v133, %v383
    %v385 = vpop.f32.mrf.mxu0
    %v386 = vpop.f32.mrf.mxu0
    %v387 = vadd.f32 %v133, %v386
    %v388 = vpop.f32.mrf.mxu0
    %389 = vmatprep.mubr.bf16.mxu0 0
    %390 = vmatmul.mubr.bf16.gmra.mxu0 %v255
    %v391 = vpop.f32.mrf.mxu0
    %v392 = vadd.f32 %v133, %v391
    %v393 = vpop.f32.mrf.mxu0
    %v394 = vpop.f32.mrf.mxu0
    %v395 = vadd.f32 %v133, %v394
    %v396 = vpop.f32.mrf.mxu0
    %397 = vmatprep.mubr.bf16.mxu0 0
    %398 = vmatmul.mubr.bf16.gmra.mxu0 %v258
    %v399 = vpop.f32.mrf.mxu0
    %v400 = vadd.f32 %v133, %v399
    %v401 = vpop.f32.mrf.mxu0
    %v402 = vpop.f32.mrf.mxu0
    %v403 = vadd.f32 %v133, %v402
    %v404 = vpop.f32.mrf.mxu0
    %405 = vmatprep.mubr.bf16.mxu0 0
    %406 = vmatmul.mubr.bf16.gmra.mxu0 %v261
    %v407 = vpop.f32.mrf.mxu0
    %v408 = vadd.f32 %v133, %v407
    %v409 = vpop.f32.mrf.mxu0
    %v410 = vpop.f32.mrf.mxu0
    %v411 = vadd.f32 %v133, %v410
    %v412 = vpop.f32.mrf.mxu0
    %413 = vmatprep.mubr.bf16.mxu0 0
    %414 = vmatmul.mubr.bf16.gmra.mxu0 %v264
    %v415 = vpop.f32.mrf.mxu0
    %v416 = vadd.f32 %v133, %v415
    %v417 = vpop.f32.mrf.mxu0
    %v418 = vpop.f32.mrf.mxu0
    %v419 = vadd.f32 %v133, %v418
    %v420 = vpop.f32.mrf.mxu0
    %421 = vmatprep.mubr.bf16.mxu0 0
    %422 = vmatmul.mubr.bf16.gmra.mxu0 %v267
    %v423 = vpop.f32.mrf.mxu0
    %v424 = vadd.f32 %v133, %v423
    %v425 = vpop.f32.mrf.mxu0
    %v426 = vpop.f32.mrf.mxu0
    %v427 = vadd.f32 %v133, %v426
    %v428 = vpop.f32.mrf.mxu0
    %429 = vdwg.mxu0
    %v430 = vmax.f32 %v304, 0.0
    %v431 = vmax.f32 %v307, 0.0
    %v432 = vmax.f32 %v312, 0.0
    %v433 = vmax.f32 %v315, 0.0
    %v434 = vmax.f32 %v320, 0.0
    %v435 = vmax.f32 %v323, 0.0
    %v436 = vmax.f32 %v328, 0.0
    %v437 = vmax.f32 %v331, 0.0
    %v438 = vmax.f32 %v336, 0.0
    %v439 = vmax.f32 %v339, 0.0
    %v440 = vmax.f32 %v344, 0.0
    %v441 = vmax.f32 %v347, 0.0
    %v442 = vmax.f32 %v352, 0.0
    %v443 = vmax.f32 %v355, 0.0
    %v444 = vmax.f32 %v360, 0.0
    %v445 = vmax.f32 %v363, 0.0
    %v446 = vmax.f32 %v368, 0.0
    %v447 = vmax.f32 %v371, 0.0
    %v448 = vmax.f32 %v376, 0.0
    %v449 = vmax.f32 %v379, 0.0
    %v450 = vmax.f32 %v384, 0.0
    %v451 = vmax.f32 %v387, 0.0
    %v452 = vmax.f32 %v392, 0.0
    %v453 = vmax.f32 %v395, 0.0
    %v454 = vmax.f32 %v400, 0.0
    %v455 = vmax.f32 %v403, 0.0
    %v456 = vmax.f32 %v408, 0.0
    %v457 = vmax.f32 %v411, 0.0
    %v458 = vmax.f32 %v416, 0.0
    %v459 = vmax.f32 %v419, 0.0
    %v460 = vmax.f32 %v424, 0.0
    %v461 = vmax.f32 %v427, 0.0
    %v462 = vpack.c.bf16 %v431, %v430
    %v463 = vpack.c.bf16 %v433, %v432
    %v464 = vpack.c.bf16 %v435, %v434
    %v465 = vpack.c.bf16 %v437, %v436
    %v466 = vpack.c.bf16 %v439, %v438
    %v467 = vpack.c.bf16 %v441, %v440
    %v468 = vpack.c.bf16 %v443, %v442
    %v469 = vpack.c.bf16 %v445, %v444
    %v470 = vpack.c.bf16 %v447, %v446
    %v471 = vpack.c.bf16 %v449, %v448
    %v472 = vpack.c.bf16 %v451, %v450
    %v473 = vpack.c.bf16 %v453, %v452
    %v474 = vpack.c.bf16 %v455, %v454
    %v475 = vpack.c.bf16 %v457, %v456
    %v476 = vpack.c.bf16 %v459, %v458
    %v477 = vpack.c.bf16 %v461, %v460
    %v478 = vld [vmem:[%s3 + $0x1] sm:$0x1]
    %v479 = vlaneseq
    %v480 = vshrl.u32 %v479, 7
    %v481 = vsub.s32 0, %v480
    %v482 = vrot.slane %v478, %v481
    %v499 = vunpack.c.l.b16 %v49
    %v500 = vunpack.c.l.b16 %v50
    %v501 = vunpack.c.l.b16 %v51
    %v502 = vunpack.c.l.b16 %v52
    %v503 = vunpack.c.l.b16 %v53
    %v504 = vunpack.c.l.b16 %v54
    %v505 = vunpack.c.l.b16 %v55
    %v506 = vunpack.c.l.b16 %v56
    %v507 = vunpack.c.l.b16 %v57
    %v508 = vunpack.c.l.b16 %v58
    %v509 = vunpack.c.l.b16 %v59
    %v510 = vunpack.c.l.b16 %v60
    %v511 = vunpack.c.l.b16 %v61
    %v512 = vunpack.c.l.b16 %v62
    %v513 = vunpack.c.l.b16 %v63
    %v514 = vunpack.c.l.b16 %v64
    %v515 = vpack.c.b16 %v500, %v499
    %v516 = vpack.c.b16 %v502, %v501
    %v517 = vpack.c.b16 %v504, %v503
    %v518 = vpack.c.b16 %v506, %v505
    %v519 = vpack.c.b16 %v508, %v507
    %v520 = vpack.c.b16 %v510, %v509
    %v521 = vpack.c.b16 %v512, %v511
    %v522 = vpack.c.b16 %v514, %v513
    %531 = vmatprep.subr.bf16.mxu0 0
    %532 = vmatpush1.bf16.msra.mxu0 %v522
    %533 = vmatprep.subr.bf16.mxu0 0
    %534 = vmatpush1.bf16.msra.mxu0 %v521
    %535 = vmatprep.subr.bf16.mxu0 0
    %536 = vmatpush1.bf16.msra.mxu0 %v520
    %537 = vmatprep.subr.bf16.mxu0 0
    %538 = vmatpush1.bf16.msra.mxu0 %v519
    %539 = vmatprep.subr.bf16.mxu0 0
    %540 = vmatpush1.bf16.msra.mxu0 %v518
    %541 = vmatprep.subr.bf16.mxu0 0
    %542 = vmatpush1.bf16.msra.mxu0 %v517
    %543 = vmatprep.subr.bf16.mxu0 0
    %544 = vmatpush1.bf16.msra.mxu0 %v516
    %545 = vmatprep.subr.bf16.mxu0 0
    %546 = vmatpush1.bf16.msra.mxu0 %v515
    %547 = vmatprep.subr.bf16.mxu0 0
    %548 = vmatpush2.bf16.msra.mxu0 0
    %549 = vmatprep.subr.bf16.mxu0 0
    %550 = vmatpush2.bf16.msra.mxu0 0
    %551 = vmatprep.subr.bf16.mxu0 0
    %552 = vmatpush2.bf16.msra.mxu0 0
    %553 = vmatprep.subr.bf16.mxu0 0
    %554 = vmatpush2.bf16.msra.mxu0 0
    %555 = vmatprep.subr.bf16.mxu0 0
    %556 = vmatpush2.bf16.msra.mxu0 0
    %557 = vmatprep.subr.bf16.mxu0 0
    %558 = vmatpush2.bf16.msra.mxu0 0
    %559 = vmatprep.subr.bf16.mxu0 0
    %560 = vmatpush2.bf16.msra.mxu0 0
    %561 = vmatprep.subr.bf16.mxu0 0
    %562 = vmatpush2.bf16.msra.mxu0 0
    %563 = vmatprep.mubr.bf16.mxu0 0
    %564 = vmatmul.mubr.bf16.gmra.mxu0 %v462
    %v565 = vpop.f32.mrf.mxu0
    %v566 = vadd.f32 %v482, %v565
    %v567 = vpop.f32.mrf.mxu0
    %v568 = vpop.f32.mrf.mxu0
    %v569 = vadd.f32 %v482, %v568
    %v570 = vpop.f32.mrf.mxu0
    %571 = vmatprep.mubr.bf16.mxu0 0
    %572 = vmatmul.mubr.bf16.gmra.mxu0 %v463
    %v573 = vpop.f32.mrf.mxu0
    %v574 = vadd.f32 %v482, %v573
    %v575 = vpop.f32.mrf.mxu0
    %v576 = vpop.f32.mrf.mxu0
    %v577 = vadd.f32 %v482, %v576
    %v578 = vpop.f32.mrf.mxu0
    %579 = vmatprep.mubr.bf16.mxu0 0
    %580 = vmatmul.mubr.bf16.gmra.mxu0 %v464
    %v581 = vpop.f32.mrf.mxu0
    %v582 = vadd.f32 %v482, %v581
    %v583 = vpop.f32.mrf.mxu0
    %v584 = vpop.f32.mrf.mxu0
    %v585 = vadd.f32 %v482, %v584
    %v586 = vpop.f32.mrf.mxu0
    %587 = vmatprep.mubr.bf16.mxu0 0
    %588 = vmatmul.mubr.bf16.gmra.mxu0 %v465
    %v589 = vpop.f32.mrf.mxu0
    %v590 = vadd.f32 %v482, %v589
    %v591 = vpop.f32.mrf.mxu0
    %v592 = vpop.f32.mrf.mxu0
    %v593 = vadd.f32 %v482, %v592
    %v594 = vpop.f32.mrf.mxu0
    %595 = vmatprep.mubr.bf16.mxu0 0
    %596 = vmatmul.mubr.bf16.gmra.mxu0 %v466
    %v597 = vpop.f32.mrf.mxu0
    %v598 = vadd.f32 %v482, %v597
    %v599 = vpop.f32.mrf.mxu0
    %v600 = vpop.f32.mrf.mxu0
    %v601 = vadd.f32 %v482, %v600
    %v602 = vpop.f32.mrf.mxu0
    %603 = vmatprep.mubr.bf16.mxu0 0
    %604 = vmatmul.mubr.bf16.gmra.mxu0 %v467
    %v605 = vpop.f32.mrf.mxu0
    %v606 = vadd.f32 %v482, %v605
    %v607 = vpop.f32.mrf.mxu0
    %v608 = vpop.f32.mrf.mxu0
    %v609 = vadd.f32 %v482, %v608
    %v610 = vpop.f32.mrf.mxu0
    %611 = vmatprep.mubr.bf16.mxu0 0
    %612 = vmatmul.mubr.bf16.gmra.mxu0 %v468
    %v613 = vpop.f32.mrf.mxu0
    %v614 = vadd.f32 %v482, %v613
    %v615 = vpop.f32.mrf.mxu0
    %v616 = vpop.f32.mrf.mxu0
    %v617 = vadd.f32 %v482, %v616
    %v618 = vpop.f32.mrf.mxu0
    %619 = vmatprep.mubr.bf16.mxu0 0
    %620 = vmatmul.mubr.bf16.gmra.mxu0 %v469
    %v621 = vpop.f32.mrf.mxu0
    %v622 = vadd.f32 %v482, %v621
    %v623 = vpop.f32.mrf.mxu0
    %v624 = vpop.f32.mrf.mxu0
    %v625 = vadd.f32 %v482, %v624
    %v626 = vpop.f32.mrf.mxu0
    %627 = vmatprep.mubr.bf16.mxu0 0
    %628 = vmatmul.mubr.bf16.gmra.mxu0 %v470
    %v629 = vpop.f32.mrf.mxu0
    %v630 = vadd.f32 %v482, %v629
    %v631 = vpop.f32.mrf.mxu0
    %v632 = vpop.f32.mrf.mxu0
    %v633 = vadd.f32 %v482, %v632
    %v634 = vpop.f32.mrf.mxu0
    %635 = vmatprep.mubr.bf16.mxu0 0
    %636 = vmatmul.mubr.bf16.gmra.mxu0 %v471
    %v637 = vpop.f32.mrf.mxu0
    %v638 = vadd.f32 %v482, %v637
    %v639 = vpop.f32.mrf.mxu0
    %v640 = vpop.f32.mrf.mxu0
    %v641 = vadd.f32 %v482, %v640
    %v642 = vpop.f32.mrf.mxu0
    %643 = vmatprep.mubr.bf16.mxu0 0
    %644 = vmatmul.mubr.bf16.gmra.mxu0 %v472
    %v645 = vpop.f32.mrf.mxu0
    %v646 = vadd.f32 %v482, %v645
    %v647 = vpop.f32.mrf.mxu0
    %v648 = vpop.f32.mrf.mxu0
    %v649 = vadd.f32 %v482, %v648
    %v650 = vpop.f32.mrf.mxu0
    %651 = vmatprep.mubr.bf16.mxu0 0
    %652 = vmatmul.mubr.bf16.gmra.mxu0 %v473
    %v653 = vpop.f32.mrf.mxu0
    %v654 = vadd.f32 %v482, %v653
    %v655 = vpop.f32.mrf.mxu0
    %v656 = vpop.f32.mrf.mxu0
    %v657 = vadd.f32 %v482, %v656
    %v658 = vpop.f32.mrf.mxu0
    %659 = vmatprep.mubr.bf16.mxu0 0
    %660 = vmatmul.mubr.bf16.gmra.mxu0 %v474
    %v661 = vpop.f32.mrf.mxu0
    %v662 = vadd.f32 %v482, %v661
    %v663 = vpop.f32.mrf.mxu0
    %v664 = vpop.f32.mrf.mxu0
    %v665 = vadd.f32 %v482, %v664
    %v666 = vpop.f32.mrf.mxu0
    %667 = vmatprep.mubr.bf16.mxu0 0
    %668 = vmatmul.mubr.bf16.gmra.mxu0 %v475
    %v669 = vpop.f32.mrf.mxu0
    %v670 = vadd.f32 %v482, %v669
    %v671 = vpop.f32.mrf.mxu0
    %v672 = vpop.f32.mrf.mxu0
    %v673 = vadd.f32 %v482, %v672
    %v674 = vpop.f32.mrf.mxu0
    %675 = vmatprep.mubr.bf16.mxu0 0
    %676 = vmatmul.mubr.bf16.gmra.mxu0 %v476
    %v677 = vpop.f32.mrf.mxu0
    %v678 = vadd.f32 %v482, %v677
    %v679 = vpop.f32.mrf.mxu0
    %v680 = vpop.f32.mrf.mxu0
    %v681 = vadd.f32 %v482, %v680
    %v682 = vpop.f32.mrf.mxu0
    %683 = vmatprep.mubr.bf16.mxu0 0
    %684 = vmatmul.mubr.bf16.gmra.mxu0 %v477
    %v685 = vpop.f32.mrf.mxu0
    %v686 = vadd.f32 %v482, %v685
    %v687 = vpop.f32.mrf.mxu0
    %v688 = vpop.f32.mrf.mxu0
    %v689 = vadd.f32 %v482, %v688
    %v690 = vpop.f32.mrf.mxu0
    %691 = vdwg.mxu0
    %v692 = vmax.f32 %v566, 0.0
    %v693 = vmax.f32 %v569, 0.0
    %v694 = vmax.f32 %v574, 0.0
    %v695 = vmax.f32 %v577, 0.0
    %v696 = vmax.f32 %v582, 0.0
    %v697 = vmax.f32 %v585, 0.0
    %v698 = vmax.f32 %v590, 0.0
    %v699 = vmax.f32 %v593, 0.0
    %v700 = vmax.f32 %v598, 0.0
    %v701 = vmax.f32 %v601, 0.0
    %v702 = vmax.f32 %v606, 0.0
    %v703 = vmax.f32 %v609, 0.0
    %v704 = vmax.f32 %v614, 0.0
    %v705 = vmax.f32 %v617, 0.0
    %v706 = vmax.f32 %v622, 0.0
    %v707 = vmax.f32 %v625, 0.0
    %v708 = vmax.f32 %v630, 0.0
    %v709 = vmax.f32 %v633, 0.0
    %v710 = vmax.f32 %v638, 0.0
    %v711 = vmax.f32 %v641, 0.0
    %v712 = vmax.f32 %v646, 0.0
    %v713 = vmax.f32 %v649, 0.0
    %v714 = vmax.f32 %v654, 0.0
    %v715 = vmax.f32 %v657, 0.0
    %v716 = vmax.f32 %v662, 0.0
    %v717 = vmax.f32 %v665, 0.0
    %v718 = vmax.f32 %v670, 0.0
    %v719 = vmax.f32 %v673, 0.0
    %v720 = vmax.f32 %v678, 0.0
    %v721 = vmax.f32 %v681, 0.0
    %v722 = vmax.f32 %v686, 0.0
    %v723 = vmax.f32 %v689, 0.0
    %v724 = vpack.c.bf16 %v693, %v692
    %v725 = vpack.c.bf16 %v695, %v694
    %v726 = vpack.c.bf16 %v697, %v696
    %v727 = vpack.c.bf16 %v699, %v698
    %v728 = vpack.c.bf16 %v701, %v700
    %v729 = vpack.c.bf16 %v703, %v702
    %v730 = vpack.c.bf16 %v705, %v704
    %v731 = vpack.c.bf16 %v707, %v706
    %v732 = vpack.c.bf16 %v709, %v708
    %v733 = vpack.c.bf16 %v711, %v710
    %v734 = vpack.c.bf16 %v713, %v712
    %v735 = vpack.c.bf16 %v715, %v714
    %v736 = vpack.c.bf16 %v717, %v716
    %v737 = vpack.c.bf16 %v719, %v718
    %v738 = vpack.c.bf16 %v721, %v720
    %v739 = vpack.c.bf16 %v723, %v722
    %v740 = vld [vmem:[%s3 + $0x2] sm:$0x1]
    %v741 = vlaneseq
    %v742 = vshrl.u32 %v741, 7
    %v743 = vsub.s32 0, %v742
    %v744 = vrot.slane %v740, %v743
    %v761 = vunpack.c.l.b16 %v65
    %v762 = vunpack.c.l.b16 %v66
    %v763 = vunpack.c.l.b16 %v67
    %v764 = vunpack.c.l.b16 %v68
    %v765 = vunpack.c.l.b16 %v69
    %v766 = vunpack.c.l.b16 %v70
    %v767 = vunpack.c.l.b16 %v71
    %v768 = vunpack.c.l.b16 %v72
    %v769 = vunpack.c.l.b16 %v73
    %v770 = vunpack.c.l.b16 %v74
    %v771 = vunpack.c.l.b16 %v75
    %v772 = vunpack.c.l.b16 %v76
    %v773 = vunpack.c.l.b16 %v77
    %v774 = vunpack.c.l.b16 %v78
    %v775 = vunpack.c.l.b16 %v79
    %v776 = vunpack.c.l.b16 %v80
    %v777 = vpack.c.b16 %v762, %v761
    %v778 = vpack.c.b16 %v764, %v763
    %v779 = vpack.c.b16 %v766, %v765
    %v780 = vpack.c.b16 %v768, %v767
    %v781 = vpack.c.b16 %v770, %v769
    %v782 = vpack.c.b16 %v772, %v771
    %v783 = vpack.c.b16 %v774, %v773
    %v784 = vpack.c.b16 %v776, %v775
    %793 = vmatprep.subr.bf16.mxu0 0
    %794 = vmatpush1.bf16.msra.mxu0 %v784
    %795 = vmatprep.subr.bf16.mxu0 0
    %796 = vmatpush1.bf16.msra.mxu0 %v783
    %797 = vmatprep.subr.bf16.mxu0 0
    %798 = vmatpush1.bf16.msra.mxu0 %v782
    %799 = vmatprep.subr.bf16.mxu0 0
    %800 = vmatpush1.bf16.msra.mxu0 %v781
    %801 = vmatprep.subr.bf16.mxu0 0
    %802 = vmatpush1.bf16.msra.mxu0 %v780
    %803 = vmatprep.subr.bf16.mxu0 0
    %804 = vmatpush1.bf16.msra.mxu0 %v779
    %805 = vmatprep.subr.bf16.mxu0 0
    %806 = vmatpush1.bf16.msra.mxu0 %v778
    %807 = vmatprep.subr.bf16.mxu0 0
    %808 = vmatpush1.bf16.msra.mxu0 %v777
    %809 = vmatprep.subr.bf16.mxu0 0
    %810 = vmatpush2.bf16.msra.mxu0 0
    %811 = vmatprep.subr.bf16.mxu0 0
    %812 = vmatpush2.bf16.msra.mxu0 0
    %813 = vmatprep.subr.bf16.mxu0 0
    %814 = vmatpush2.bf16.msra.mxu0 0
    %815 = vmatprep.subr.bf16.mxu0 0
    %816 = vmatpush2.bf16.msra.mxu0 0
    %817 = vmatprep.subr.bf16.mxu0 0
    %818 = vmatpush2.bf16.msra.mxu0 0
    %819 = vmatprep.subr.bf16.mxu0 0
    %820 = vmatpush2.bf16.msra.mxu0 0
    %821 = vmatprep.subr.bf16.mxu0 0
    %822 = vmatpush2.bf16.msra.mxu0 0
    %823 = vmatprep.subr.bf16.mxu0 0
    %824 = vmatpush2.bf16.msra.mxu0 0
    %825 = vmatprep.mubr.bf16.mxu0 0
    %826 = vmatmul.mubr.bf16.gmra.mxu0 %v724
    %v827 = vpop.f32.mrf.mxu0
    %v828 = vadd.f32 %v744, %v827
    %v829 = vpop.f32.mrf.mxu0
    %v830 = vpop.f32.mrf.mxu0
    %v831 = vadd.f32 %v744, %v830
    %v832 = vpop.f32.mrf.mxu0
    %833 = vmatprep.mubr.bf16.mxu0 0
    %834 = vmatmul.mubr.bf16.gmra.mxu0 %v725
    %v835 = vpop.f32.mrf.mxu0
    %v836 = vadd.f32 %v744, %v835
    %v837 = vpop.f32.mrf.mxu0
    %v838 = vpop.f32.mrf.mxu0
    %v839 = vadd.f32 %v744, %v838
    %v840 = vpop.f32.mrf.mxu0
    %841 = vmatprep.mubr.bf16.mxu0 0
    %842 = vmatmul.mubr.bf16.gmra.mxu0 %v726
    %v843 = vpop.f32.mrf.mxu0
    %v844 = vadd.f32 %v744, %v843
    %v845 = vpop.f32.mrf.mxu0
    %v846 = vpop.f32.mrf.mxu0
    %v847 = vadd.f32 %v744, %v846
    %v848 = vpop.f32.mrf.mxu0
    %849 = vmatprep.mubr.bf16.mxu0 0
    %850 = vmatmul.mubr.bf16.gmra.mxu0 %v727
    %v851 = vpop.f32.mrf.mxu0
    %v852 = vadd.f32 %v744, %v851
    %v853 = vpop.f32.mrf.mxu0
    %v854 = vpop.f32.mrf.mxu0
    %v855 = vadd.f32 %v744, %v854
    %v856 = vpop.f32.mrf.mxu0
    %857 = vmatprep.mubr.bf16.mxu0 0
    %858 = vmatmul.mubr.bf16.gmra.mxu0 %v728
    %v859 = vpop.f32.mrf.mxu0
    %v860 = vadd.f32 %v744, %v859
    %v861 = vpop.f32.mrf.mxu0
    %v862 = vpop.f32.mrf.mxu0
    %v863 = vadd.f32 %v744, %v862
    %v864 = vpop.f32.mrf.mxu0
    %865 = vmatprep.mubr.bf16.mxu0 0
    %866 = vmatmul.mubr.bf16.gmra.mxu0 %v729
    %v867 = vpop.f32.mrf.mxu0
    %v868 = vadd.f32 %v744, %v867
    %v869 = vpop.f32.mrf.mxu0
    %v870 = vpop.f32.mrf.mxu0
    %v871 = vadd.f32 %v744, %v870
    %v872 = vpop.f32.mrf.mxu0
    %873 = vmatprep.mubr.bf16.mxu0 0
    %874 = vmatmul.mubr.bf16.gmra.mxu0 %v730
    %v875 = vpop.f32.mrf.mxu0
    %v876 = vadd.f32 %v744, %v875
    %v877 = vpop.f32.mrf.mxu0
    %v878 = vpop.f32.mrf.mxu0
    %v879 = vadd.f32 %v744, %v878
    %v880 = vpop.f32.mrf.mxu0
    %881 = vmatprep.mubr.bf16.mxu0 0
    %882 = vmatmul.mubr.bf16.gmra.mxu0 %v731
    %v883 = vpop.f32.mrf.mxu0
    %v884 = vadd.f32 %v744, %v883
    %v885 = vpop.f32.mrf.mxu0
    %v886 = vpop.f32.mrf.mxu0
    %v887 = vadd.f32 %v744, %v886
    %v888 = vpop.f32.mrf.mxu0
    %889 = vmatprep.mubr.bf16.mxu0 0
    %890 = vmatmul.mubr.bf16.gmra.mxu0 %v732
    %v891 = vpop.f32.mrf.mxu0
    %v892 = vadd.f32 %v744, %v891
    %v893 = vpop.f32.mrf.mxu0
    %v894 = vpop.f32.mrf.mxu0
    %v895 = vadd.f32 %v744, %v894
    %v896 = vpop.f32.mrf.mxu0
    %897 = vmatprep.mubr.bf16.mxu0 0
    %898 = vmatmul.mubr.bf16.gmra.mxu0 %v733
    %v899 = vpop.f32.mrf.mxu0
    %v900 = vadd.f32 %v744, %v899
    %v901 = vpop.f32.mrf.mxu0
    %v902 = vpop.f32.mrf.mxu0
    %v903 = vadd.f32 %v744, %v902
    %v904 = vpop.f32.mrf.mxu0
    %905 = vmatprep.mubr.bf16.mxu0 0
    %906 = vmatmul.mubr.bf16.gmra.mxu0 %v734
    %v907 = vpop.f32.mrf.mxu0
    %v908 = vadd.f32 %v744, %v907
    %v909 = vpop.f32.mrf.mxu0
    %v910 = vpop.f32.mrf.mxu0
    %v911 = vadd.f32 %v744, %v910
    %v912 = vpop.f32.mrf.mxu0
    %913 = vmatprep.mubr.bf16.mxu0 0
    %914 = vmatmul.mubr.bf16.gmra.mxu0 %v735
    %v915 = vpop.f32.mrf.mxu0
    %v916 = vadd.f32 %v744, %v915
    %v917 = vpop.f32.mrf.mxu0
    %v918 = vpop.f32.mrf.mxu0
    %v919 = vadd.f32 %v744, %v918
    %v920 = vpop.f32.mrf.mxu0
    %921 = vmatprep.mubr.bf16.mxu0 0
    %922 = vmatmul.mubr.bf16.gmra.mxu0 %v736
    %v923 = vpop.f32.mrf.mxu0
    %v924 = vadd.f32 %v744, %v923
    %v925 = vpop.f32.mrf.mxu0
    %v926 = vpop.f32.mrf.mxu0
    %v927 = vadd.f32 %v744, %v926
    %v928 = vpop.f32.mrf.mxu0
    %929 = vmatprep.mubr.bf16.mxu0 0
    %930 = vmatmul.mubr.bf16.gmra.mxu0 %v737
    %v931 = vpop.f32.mrf.mxu0
    %v932 = vadd.f32 %v744, %v931
    %v933 = vpop.f32.mrf.mxu0
    %v934 = vpop.f32.mrf.mxu0
    %v935 = vadd.f32 %v744, %v934
    %v936 = vpop.f32.mrf.mxu0
    %937 = vmatprep.mubr.bf16.mxu0 0
    %938 = vmatmul.mubr.bf16.gmra.mxu0 %v738
    %v939 = vpop.f32.mrf.mxu0
    %v940 = vadd.f32 %v744, %v939
    %v941 = vpop.f32.mrf.mxu0
    %v942 = vpop.f32.mrf.mxu0
    %v943 = vadd.f32 %v744, %v942
    %v944 = vpop.f32.mrf.mxu0
    %945 = vmatprep.mubr.bf16.mxu0 0
    %946 = vmatmul.mubr.bf16.gmra.mxu0 %v739
    %v947 = vpop.f32.mrf.mxu0
    %v948 = vadd.f32 %v744, %v947
    %v949 = vpop.f32.mrf.mxu0
    %v950 = vpop.f32.mrf.mxu0
    %v951 = vadd.f32 %v744, %v950
    %v952 = vpop.f32.mrf.mxu0
    %953 = vdwg.mxu0
    %v954 = vmax.f32 %v828, 0.0
    %v955 = vmax.f32 %v831, 0.0
    %v956 = vmax.f32 %v836, 0.0
    %v957 = vmax.f32 %v839, 0.0
    %v958 = vmax.f32 %v844, 0.0
    %v959 = vmax.f32 %v847, 0.0
    %v960 = vmax.f32 %v852, 0.0
    %v961 = vmax.f32 %v855, 0.0
    %v962 = vmax.f32 %v860, 0.0
    %v963 = vmax.f32 %v863, 0.0
    %v964 = vmax.f32 %v868, 0.0
    %v965 = vmax.f32 %v871, 0.0
    %v966 = vmax.f32 %v876, 0.0
    %v967 = vmax.f32 %v879, 0.0
    %v968 = vmax.f32 %v884, 0.0
    %v969 = vmax.f32 %v887, 0.0
    %v970 = vmax.f32 %v892, 0.0
    %v971 = vmax.f32 %v895, 0.0
    %v972 = vmax.f32 %v900, 0.0
    %v973 = vmax.f32 %v903, 0.0
    %v974 = vmax.f32 %v908, 0.0
    %v975 = vmax.f32 %v911, 0.0
    %v976 = vmax.f32 %v916, 0.0
    %v977 = vmax.f32 %v919, 0.0
    %v978 = vmax.f32 %v924, 0.0
    %v979 = vmax.f32 %v927, 0.0
    %v980 = vmax.f32 %v932, 0.0
    %v981 = vmax.f32 %v935, 0.0
    %v982 = vmax.f32 %v940, 0.0
    %v983 = vmax.f32 %v943, 0.0
    %v984 = vmax.f32 %v948, 0.0
    %v985 = vmax.f32 %v951, 0.0
    %v986 = vpack.c.bf16 %v955, %v954
    %v987 = vpack.c.bf16 %v957, %v956
    %v988 = vpack.c.bf16 %v959, %v958
    %v989 = vpack.c.bf16 %v961, %v960
    %v990 = vpack.c.bf16 %v963, %v962
    %v991 = vpack.c.bf16 %v965, %v964
    %v992 = vpack.c.bf16 %v967, %v966
    %v993 = vpack.c.bf16 %v969, %v968
    %v994 = vpack.c.bf16 %v971, %v970
    %v995 = vpack.c.bf16 %v973, %v972
    %v996 = vpack.c.bf16 %v975, %v974
    %v997 = vpack.c.bf16 %v977, %v976
    %v998 = vpack.c.bf16 %v979, %v978
    %v999 = vpack.c.bf16 %v981, %v980
    %v1000 = vpack.c.bf16 %v983, %v982
    %v1001 = vpack.c.bf16 %v985, %v984
    %v1002 = vld [vmem:[%s3 + $0x3] sm:$0x1]
    %v1003 = vlaneseq
    %v1004 = vshrl.u32 %v1003, 7
    %v1005 = vsub.s32 0, %v1004
    %v1006 = vrot.slane %v1002, %v1005
    %v1023 = vunpack.c.l.b16 %v81
    %v1024 = vunpack.c.l.b16 %v82
    %v1025 = vunpack.c.l.b16 %v83
    %v1026 = vunpack.c.l.b16 %v84
    %v1027 = vunpack.c.l.b16 %v85
    %v1028 = vunpack.c.l.b16 %v86
    %v1029 = vunpack.c.l.b16 %v87
    %v1030 = vunpack.c.l.b16 %v88
    %v1031 = vunpack.c.l.b16 %v89
    %v1032 = vunpack.c.l.b16 %v90
    %v1033 = vunpack.c.l.b16 %v91
    %v1034 = vunpack.c.l.b16 %v92
    %v1035 = vunpack.c.l.b16 %v93
    %v1036 = vunpack.c.l.b16 %v94
    %v1037 = vunpack.c.l.b16 %v95
    %v1038 = vunpack.c.l.b16 %v96
    %v1039 = vpack.c.b16 %v1024, %v1023
    %v1040 = vpack.c.b16 %v1026, %v1025
    %v1041 = vpack.c.b16 %v1028, %v1027
    %v1042 = vpack.c.b16 %v1030, %v1029
    %v1043 = vpack.c.b16 %v1032, %v1031
    %v1044 = vpack.c.b16 %v1034, %v1033
    %v1045 = vpack.c.b16 %v1036, %v1035
    %v1046 = vpack.c.b16 %v1038, %v1037
    %1055 = vmatprep.subr.bf16.mxu0 0
    %1056 = vmatpush1.bf16.msra.mxu0 %v1046
    %1057 = vmatprep.subr.bf16.mxu0 0
    %1058 = vmatpush1.bf16.msra.mxu0 %v1045
    %1059 = vmatprep.subr.bf16.mxu0 0
    %1060 = vmatpush1.bf16.msra.mxu0 %v1044
    %1061 = vmatprep.subr.bf16.mxu0 0
    %1062 = vmatpush1.bf16.msra.mxu0 %v1043
    %1063 = vmatprep.subr.bf16.mxu0 0
    %1064 = vmatpush1.bf16.msra.mxu0 %v1042
    %1065 = vmatprep.subr.bf16.mxu0 0
    %1066 = vmatpush1.bf16.msra.mxu0 %v1041
    %1067 = vmatprep.subr.bf16.mxu0 0
    %1068 = vmatpush1.bf16.msra.mxu0 %v1040
    %1069 = vmatprep.subr.bf16.mxu0 0
    %1070 = vmatpush1.bf16.msra.mxu0 %v1039
    %1071 = vmatprep.subr.bf16.mxu0 0
    %1072 = vmatpush2.bf16.msra.mxu0 0
    %1073 = vmatprep.subr.bf16.mxu0 0
    %1074 = vmatpush2.bf16.msra.mxu0 0
    %1075 = vmatprep.subr.bf16.mxu0 0
    %1076 = vmatpush2.bf16.msra.mxu0 0
    %1077 = vmatprep.subr.bf16.mxu0 0
    %1078 = vmatpush2.bf16.msra.mxu0 0
    %1079 = vmatprep.subr.bf16.mxu0 0
    %1080 = vmatpush2.bf16.msra.mxu0 0
    %1081 = vmatprep.subr.bf16.mxu0 0
    %1082 = vmatpush2.bf16.msra.mxu0 0
    %1083 = vmatprep.subr.bf16.mxu0 0
    %1084 = vmatpush2.bf16.msra.mxu0 0
    %1085 = vmatprep.subr.bf16.mxu0 0
    %1086 = vmatpush2.bf16.msra.mxu0 0
    %1087 = vmatprep.mubr.bf16.mxu0 0
    %1088 = vmatmul.mubr.bf16.gmra.mxu0 %v986
    %v1089 = vpop.f32.mrf.mxu0
    %v1090 = vadd.f32 %v1006, %v1089
    %v1091 = vpop.f32.mrf.mxu0
    %v1092 = vpop.f32.mrf.mxu0
    %v1093 = vadd.f32 %v1006, %v1092
    %v1094 = vpop.f32.mrf.mxu0
    %1095 = vmatprep.mubr.bf16.mxu0 0
    %1096 = vmatmul.mubr.bf16.gmra.mxu0 %v987
    %v1097 = vpop.f32.mrf.mxu0
    %v1098 = vadd.f32 %v1006, %v1097
    %v1099 = vpop.f32.mrf.mxu0
    %v1100 = vpop.f32.mrf.mxu0
    %v1101 = vadd.f32 %v1006, %v1100
    %v1102 = vpop.f32.mrf.mxu0
    %1103 = vmatprep.mubr.bf16.mxu0 0
    %1104 = vmatmul.mubr.bf16.gmra.mxu0 %v988
    %v1105 = vpop.f32.mrf.mxu0
    %v1106 = vadd.f32 %v1006, %v1105
    %v1107 = vpop.f32.mrf.mxu0
    %v1108 = vpop.f32.mrf.mxu0
    %v1109 = vadd.f32 %v1006, %v1108
    %v1110 = vpop.f32.mrf.mxu0
    %1111 = vmatprep.mubr.bf16.mxu0 0
    %1112 = vmatmul.mubr.bf16.gmra.mxu0 %v989
    %v1113 = vpop.f32.mrf.mxu0
    %v1114 = vadd.f32 %v1006, %v1113
    %v1115 = vpop.f32.mrf.mxu0
    %v1116 = vpop.f32.mrf.mxu0
    %v1117 = vadd.f32 %v1006, %v1116
    %v1118 = vpop.f32.mrf.mxu0
    %1119 = vmatprep.mubr.bf16.mxu0 0
    %1120 = vmatmul.mubr.bf16.gmra.mxu0 %v990
    %v1121 = vpop.f32.mrf.mxu0
    %v1122 = vadd.f32 %v1006, %v1121
    %v1123 = vpop.f32.mrf.mxu0
    %v1124 = vpop.f32.mrf.mxu0
    %v1125 = vadd.f32 %v1006, %v1124
    %v1126 = vpop.f32.mrf.mxu0
    %1127 = vmatprep.mubr.bf16.mxu0 0
    %1128 = vmatmul.mubr.bf16.gmra.mxu0 %v991
    %v1129 = vpop.f32.mrf.mxu0
    %v1130 = vadd.f32 %v1006, %v1129
    %v1131 = vpop.f32.mrf.mxu0
    %v1132 = vpop.f32.mrf.mxu0
    %v1133 = vadd.f32 %v1006, %v1132
    %v1134 = vpop.f32.mrf.mxu0
    %1135 = vmatprep.mubr.bf16.mxu0 0
    %1136 = vmatmul.mubr.bf16.gmra.mxu0 %v992
    %v1137 = vpop.f32.mrf.mxu0
    %v1138 = vadd.f32 %v1006, %v1137
    %v1139 = vpop.f32.mrf.mxu0
    %v1140 = vpop.f32.mrf.mxu0
    %v1141 = vadd.f32 %v1006, %v1140
    %v1142 = vpop.f32.mrf.mxu0
    %1143 = vmatprep.mubr.bf16.mxu0 0
    %1144 = vmatmul.mubr.bf16.gmra.mxu0 %v993
    %v1145 = vpop.f32.mrf.mxu0
    %v1146 = vadd.f32 %v1006, %v1145
    %v1147 = vpop.f32.mrf.mxu0
    %v1148 = vpop.f32.mrf.mxu0
    %v1149 = vadd.f32 %v1006, %v1148
    %v1150 = vpop.f32.mrf.mxu0
    %1151 = vmatprep.mubr.bf16.mxu0 0
    %1152 = vmatmul.mubr.bf16.gmra.mxu0 %v994
    %v1153 = vpop.f32.mrf.mxu0
    %v1154 = vadd.f32 %v1006, %v1153
    %v1155 = vpop.f32.mrf.mxu0
    %v1156 = vpop.f32.mrf.mxu0
    %v1157 = vadd.f32 %v1006, %v1156
    %v1158 = vpop.f32.mrf.mxu0
    %1159 = vmatprep.mubr.bf16.mxu0 0
    %1160 = vmatmul.mubr.bf16.gmra.mxu0 %v995
    %v1161 = vpop.f32.mrf.mxu0
    %v1162 = vadd.f32 %v1006, %v1161
    %v1163 = vpop.f32.mrf.mxu0
    %v1164 = vpop.f32.mrf.mxu0
    %v1165 = vadd.f32 %v1006, %v1164
    %v1166 = vpop.f32.mrf.mxu0
    %1167 = vmatprep.mubr.bf16.mxu0 0
    %1168 = vmatmul.mubr.bf16.gmra.mxu0 %v996
    %v1169 = vpop.f32.mrf.mxu0
    %v1170 = vadd.f32 %v1006, %v1169
    %v1171 = vpop.f32.mrf.mxu0
    %v1172 = vpop.f32.mrf.mxu0
    %v1173 = vadd.f32 %v1006, %v1172
    %v1174 = vpop.f32.mrf.mxu0
    %1175 = vmatprep.mubr.bf16.mxu0 0
    %1176 = vmatmul.mubr.bf16.gmra.mxu0 %v997
    %v1177 = vpop.f32.mrf.mxu0
    %v1178 = vadd.f32 %v1006, %v1177
    %v1179 = vpop.f32.mrf.mxu0
    %v1180 = vpop.f32.mrf.mxu0
    %v1181 = vadd.f32 %v1006, %v1180
    %v1182 = vpop.f32.mrf.mxu0
    %1183 = vmatprep.mubr.bf16.mxu0 0
    %1184 = vmatmul.mubr.bf16.gmra.mxu0 %v998
    %v1185 = vpop.f32.mrf.mxu0
    %v1186 = vadd.f32 %v1006, %v1185
    %v1187 = vpop.f32.mrf.mxu0
    %v1188 = vpop.f32.mrf.mxu0
    %v1189 = vadd.f32 %v1006, %v1188
    %v1190 = vpop.f32.mrf.mxu0
    %1191 = vmatprep.mubr.bf16.mxu0 0
    %1192 = vmatmul.mubr.bf16.gmra.mxu0 %v999
    %v1193 = vpop.f32.mrf.mxu0
    %v1194 = vadd.f32 %v1006, %v1193
    %v1195 = vpop.f32.mrf.mxu0
    %v1196 = vpop.f32.mrf.mxu0
    %v1197 = vadd.f32 %v1006, %v1196
    %v1198 = vpop.f32.mrf.mxu0
    %1199 = vmatprep.mubr.bf16.mxu0 0
    %1200 = vmatmul.mubr.bf16.gmra.mxu0 %v1000
    %v1201 = vpop.f32.mrf.mxu0
    %v1202 = vadd.f32 %v1006, %v1201
    %v1203 = vpop.f32.mrf.mxu0
    %v1204 = vpop.f32.mrf.mxu0
    %v1205 = vadd.f32 %v1006, %v1204
    %v1206 = vpop.f32.mrf.mxu0
    %1207 = vmatprep.mubr.bf16.mxu0 0
    %1208 = vmatmul.mubr.bf16.gmra.mxu0 %v1001
    %v1209 = vpop.f32.mrf.mxu0
    %v1210 = vadd.f32 %v1006, %v1209
    %v1211 = vpop.f32.mrf.mxu0
    %v1212 = vpop.f32.mrf.mxu0
    %v1213 = vadd.f32 %v1006, %v1212
    %v1214 = vpop.f32.mrf.mxu0
    %1215 = vdwg.mxu0
    %v1216 = vld [vmem:[#allocation2] sm:$0xff]
    %v1217 = vld [vmem:[#allocation2 + $0x8] sm:$0xff]
    %v1218 = vld [vmem:[#allocation2 + $0x10] sm:$0xff]
    %v1219 = vld [vmem:[#allocation2 + $0x18] sm:$0xff]
    %v1220 = vld [vmem:[#allocation2 + $0x20] sm:$0xff]
    %v1221 = vld [vmem:[#allocation2 + $0x28] sm:$0xff]
    %v1222 = vld [vmem:[#allocation2 + $0x30] sm:$0xff]
    %v1223 = vld [vmem:[#allocation2 + $0x38] sm:$0xff]
    %v1224 = vld [vmem:[#allocation2 + $0x40] sm:$0xff]
    %v1225 = vld [vmem:[#allocation2 + $0x48] sm:$0xff]
    %v1226 = vld [vmem:[#allocation2 + $0x50] sm:$0xff]
    %v1227 = vld [vmem:[#allocation2 + $0x58] sm:$0xff]
    %v1228 = vld [vmem:[#allocation2 + $0x60] sm:$0xff]
    %v1229 = vld [vmem:[#allocation2 + $0x68] sm:$0xff]
    %v1230 = vld [vmem:[#allocation2 + $0x70] sm:$0xff]
    %v1231 = vld [vmem:[#allocation2 + $0x78] sm:$0xff]
    %v1232 = vld [vmem:[#allocation2 + $0x80] sm:$0xff]
    %v1233 = vld [vmem:[#allocation2 + $0x88] sm:$0xff]
    %v1234 = vld [vmem:[#allocation2 + $0x90] sm:$0xff]
    %v1235 = vld [vmem:[#allocation2 + $0x98] sm:$0xff]
    %v1236 = vld [vmem:[#allocation2 + $0xa0] sm:$0xff]
    %v1237 = vld [vmem:[#allocation2 + $0xa8] sm:$0xff]
    %v1238 = vld [vmem:[#allocation2 + $0xb0] sm:$0xff]
    %v1239 = vld [vmem:[#allocation2 + $0xb8] sm:$0xff]
    %v1240 = vld [vmem:[#allocation2 + $0xc0] sm:$0xff]
    %v1241 = vld [vmem:[#allocation2 + $0xc8] sm:$0xff]
    %v1242 = vld [vmem:[#allocation2 + $0xd0] sm:$0xff]
    %v1243 = vld [vmem:[#allocation2 + $0xd8] sm:$0xff]
    %v1244 = vld [vmem:[#allocation2 + $0xe0] sm:$0xff]
    %v1245 = vld [vmem:[#allocation2 + $0xe8] sm:$0xff]
    %v1246 = vld [vmem:[#allocation2 + $0xf0] sm:$0xff]
    %v1247 = vld [vmem:[#allocation2 + $0xf8] sm:$0xff]
    %v1248 = vadd.f32 %v1216, %v1217
    %v1249 = vadd.f32 %v1248, %v1218
    %v1250 = vadd.f32 %v1249, %v1219
    %v1251 = vadd.f32 %v1250, %v1220
    %v1252 = vadd.f32 %v1251, %v1221
    %v1253 = vadd.f32 %v1252, %v1222
    %v1254 = vadd.f32 %v1253, %v1223
    %v1255 = vadd.f32 %v1254, %v1224
    %v1256 = vadd.f32 %v1255, %v1225
    %v1257 = vadd.f32 %v1256, %v1226
    %v1258 = vadd.f32 %v1257, %v1227
    %v1259 = vadd.f32 %v1258, %v1228
    %v1260 = vadd.f32 %v1259, %v1229
    %v1261 = vadd.f32 %v1260, %v1230
    %v1262 = vadd.f32 %v1261, %v1231
    %v1263 = vadd.f32 %v1262, %v1232
    %v1264 = vadd.f32 %v1263, %v1233
    %v1265 = vadd.f32 %v1264, %v1234
    %v1266 = vadd.f32 %v1265, %v1235
    %v1267 = vadd.f32 %v1266, %v1236
    %v1268 = vadd.f32 %v1267, %v1237
    %v1269 = vadd.f32 %v1268, %v1238
    %v1270 = vadd.f32 %v1269, %v1239
    %v1271 = vadd.f32 %v1270, %v1240
    %v1272 = vadd.f32 %v1271, %v1241
    %v1273 = vadd.f32 %v1272, %v1242
    %v1274 = vadd.f32 %v1273, %v1243
    %v1275 = vadd.f32 %v1274, %v1244
    %v1276 = vadd.f32 %v1275, %v1245
    %v1277 = vadd.f32 %v1276, %v1246
    %v1278 = vadd.f32 %v1277, %v1247
    %v1279 = vrot.slane %v1278, 4
    %v1280 = vadd.f32 %v1278, %v1279
    %v1281 = vrot.slane %v1280, 2
    %v1282 = vadd.f32 %v1280, %v1281
    %v1283 = vrot.slane %v1282, 1
    %v1284 = vadd.f32 %v1282, %v1283
    %v1285 = vrcp.pop 256.0
    %v1286 = vmul.f32 %v1284, %v1285
    %v1287 = vsub.f32 %v1216, %v1286
    %v1288 = vsub.f32 %v1217, %v1286
    %v1289 = vsub.f32 %v1218, %v1286
    %v1290 = vsub.f32 %v1219, %v1286
    %v1291 = vsub.f32 %v1220, %v1286
    %v1292 = vsub.f32 %v1221, %v1286
    %v1293 = vsub.f32 %v1222, %v1286
    %v1294 = vsub.f32 %v1223, %v1286
    %v1295 = vsub.f32 %v1224, %v1286
    %v1296 = vsub.f32 %v1225, %v1286
    %v1297 = vsub.f32 %v1226, %v1286
    %v1298 = vsub.f32 %v1227, %v1286
    %v1299 = vsub.f32 %v1228, %v1286
    %v1300 = vsub.f32 %v1229, %v1286
    %v1301 = vsub.f32 %v1230, %v1286
    %v1302 = vsub.f32 %v1231, %v1286
    %v1303 = vsub.f32 %v1232, %v1286
    %v1304 = vsub.f32 %v1233, %v1286
    %v1305 = vsub.f32 %v1234, %v1286
    %v1306 = vsub.f32 %v1235, %v1286
    %v1307 = vsub.f32 %v1236, %v1286
    %v1308 = vsub.f32 %v1237, %v1286
    %v1309 = vsub.f32 %v1238, %v1286
    %v1310 = vsub.f32 %v1239, %v1286
    %v1311 = vsub.f32 %v1240, %v1286
    %v1312 = vsub.f32 %v1241, %v1286
    %v1313 = vsub.f32 %v1242, %v1286
    %v1314 = vsub.f32 %v1243, %v1286
    %v1315 = vsub.f32 %v1244, %v1286
    %v1316 = vsub.f32 %v1245, %v1286
    %v1317 = vsub.f32 %v1246, %v1286
    %v1318 = vsub.f32 %v1247, %v1286
    %v1319 = vmul.f32 %v1287, %v1287
    %v1320 = vmul.f32 %v1288, %v1288
    %v1321 = vmul.f32 %v1289, %v1289
    %v1322 = vmul.f32 %v1290, %v1290
    %v1323 = vmul.f32 %v1291, %v1291
    %v1324 = vmul.f32 %v1292, %v1292
    %v1325 = vmul.f32 %v1293, %v1293
    %v1326 = vmul.f32 %v1294, %v1294
    %v1327 = vmul.f32 %v1295, %v1295
    %v1328 = vmul.f32 %v1296, %v1296
    %v1329 = vmul.f32 %v1297, %v1297
    %v1330 = vmul.f32 %v1298, %v1298
    %v1331 = vmul.f32 %v1299, %v1299
    %v1332 = vmul.f32 %v1300, %v1300
    %v1333 = vmul.f32 %v1301, %v1301
    %v1334 = vmul.f32 %v1302, %v1302
    %v1335 = vmul.f32 %v1303, %v1303
    %v1336 = vmul.f32 %v1304, %v1304
    %v1337 = vmul.f32 %v1305, %v1305
    %v1338 = vmul.f32 %v1306, %v1306
    %v1339 = vmul.f32 %v1307, %v1307
    %v1340 = vmul.f32 %v1308, %v1308
    %v1341 = vmul.f32 %v1309, %v1309
    %v1342 = vmul.f32 %v1310, %v1310
    %v1343 = vmul.f32 %v1311, %v1311
    %v1344 = vmul.f32 %v1312, %v1312
    %v1345 = vmul.f32 %v1313, %v1313
    %v1346 = vmul.f32 %v1314, %v1314
    %v1347 = vmul.f32 %v1315, %v1315
    %v1348 = vmul.f32 %v1316, %v1316
    %v1349 = vmul.f32 %v1317, %v1317
    %v1350 = vmul.f32 %v1318, %v1318
    %v1351 = vadd.f32 %v1319, %v1320
    %v1352 = vadd.f32 %v1351, %v1321
    %v1353 = vadd.f32 %v1352, %v1322
    %v1354 = vadd.f32 %v1353, %v1323
    %v1355 = vadd.f32 %v1354, %v1324
    %v1356 = vadd.f32 %v1355, %v1325
    %v1357 = vadd.f32 %v1356, %v1326
    %v1358 = vadd.f32 %v1357, %v1327
    %v1359 = vadd.f32 %v1358, %v1328
    %v1360 = vadd.f32 %v1359, %v1329
    %v1361 = vadd.f32 %v1360, %v1330
    %v1362 = vadd.f32 %v1361, %v1331
    %v1363 = vadd.f32 %v1362, %v1332
    %v1364 = vadd.f32 %v1363, %v1333
    %v1365 = vadd.f32 %v1364, %v1334
    %v1366 = vadd.f32 %v1365, %v1335
    %v1367 = vadd.f32 %v1366, %v1336
    %v1368 = vadd.f32 %v1367, %v1337
    %v1369 = vadd.f32 %v1368, %v1338
    %v1370 = vadd.f32 %v1369, %v1339
    %v1371 = vadd.f32 %v1370, %v1340
    %v1372 = vadd.f32 %v1371, %v1341
    %v1373 = vadd.f32 %v1372, %v1342
    %v1374 = vadd.f32 %v1373, %v1343
    %v1375 = vadd.f32 %v1374, %v1344
    %v1376 = vadd.f32 %v1375, %v1345
    %v1377 = vadd.f32 %v1376, %v1346
    %v1378 = vadd.f32 %v1377, %v1347
    %v1379 = vadd.f32 %v1378, %v1348
    %v1380 = vadd.f32 %v1379, %v1349
    %v1381 = vadd.f32 %v1380, %v1350
    %v1382 = vrot.slane %v1381, 4
    %v1383 = vadd.f32 %v1381, %v1382
    %v1384 = vrot.slane %v1383, 2
    %v1385 = vadd.f32 %v1383, %v1384
    %v1386 = vrot.slane %v1385, 1
    %v1387 = vadd.f32 %v1385, %v1386
    %v1388 = vmul.f32 %v1387, %v1285
    %v1389 = vadd.f32 %v1388, 1e-05
    %v1390 = vrsqrt.pop %v1389
    %v1391 = vmul.f32 %v1287, %v1390
    %v1392 = vmul.f32 %v1288, %v1390
    %v1393 = vmul.f32 %v1289, %v1390
    %v1394 = vmul.f32 %v1290, %v1390
    %v1395 = vmul.f32 %v1291, %v1390
    %v1396 = vmul.f32 %v1292, %v1390
    %v1397 = vmul.f32 %v1293, %v1390
    %v1398 = vmul.f32 %v1294, %v1390
    %v1399 = vmul.f32 %v1295, %v1390
    %v1400 = vmul.f32 %v1296, %v1390
    %v1401 = vmul.f32 %v1297, %v1390
    %v1402 = vmul.f32 %v1298, %v1390
    %v1403 = vmul.f32 %v1299, %v1390
    %v1404 = vmul.f32 %v1300, %v1390
    %v1405 = vmul.f32 %v1301, %v1390
    %v1406 = vmul.f32 %v1302, %v1390
    %v1407 = vmul.f32 %v1303, %v1390
    %v1408 = vmul.f32 %v1304, %v1390
    %v1409 = vmul.f32 %v1305, %v1390
    %v1410 = vmul.f32 %v1306, %v1390
    %v1411 = vmul.f32 %v1307, %v1390
    %v1412 = vmul.f32 %v1308, %v1390
    %v1413 = vmul.f32 %v1309, %v1390
    %v1414 = vmul.f32 %v1310, %v1390
    %v1415 = vmul.f32 %v1311, %v1390
    %v1416 = vmul.f32 %v1312, %v1390
    %v1417 = vmul.f32 %v1313, %v1390
    %v1418 = vmul.f32 %v1314, %v1390
    %v1419 = vmul.f32 %v1315, %v1390
    %v1420 = vmul.f32 %v1316, %v1390
    %v1421 = vmul.f32 %v1317, %v1390
    %v1422 = vmul.f32 %v1318, %v1390
    %v1423 = vadd.f32 %v1090, %v1093
    %v1424 = vadd.f32 %v1423, %v1098
    %v1425 = vadd.f32 %v1424, %v1101
    %v1426 = vadd.f32 %v1425, %v1106
    %v1427 = vadd.f32 %v1426, %v1109
    %v1428 = vadd.f32 %v1427, %v1114
    %v1429 = vadd.f32 %v1428, %v1117
    %v1430 = vadd.f32 %v1429, %v1122
    %v1431 = vadd.f32 %v1430, %v1125
    %v1432 = vadd.f32 %v1431, %v1130
    %v1433 = vadd.f32 %v1432, %v1133
    %v1434 = vadd.f32 %v1433, %v1138
    %v1435 = vadd.f32 %v1434, %v1141
    %v1436 = vadd.f32 %v1435, %v1146
    %v1437 = vadd.f32 %v1436, %v1149
    %v1438 = vadd.f32 %v1437, %v1154
    %v1439 = vadd.f32 %v1438, %v1157
    %v1440 = vadd.f32 %v1439, %v1162
    %v1441 = vadd.f32 %v1440, %v1165
    %v1442 = vadd.f32 %v1441, %v1170
    %v1443 = vadd.f32 %v1442, %v1173
    %v1444 = vadd.f32 %v1443, %v1178
    %v1445 = vadd.f32 %v1444, %v1181
    %v1446 = vadd.f32 %v1445, %v1186
    %v1447 = vadd.f32 %v1446, %v1189
    %v1448 = vadd.f32 %v1447, %v1194
    %v1449 = vadd.f32 %v1448, %v1197
    %v1450 = vadd.f32 %v1449, %v1202
    %v1451 = vadd.f32 %v1450, %v1205
    %v1452 = vadd.f32 %v1451, %v1210
    %v1453 = vadd.f32 %v1452, %v1213
    %v1454 = vrot.slane %v1453, 4
    %v1455 = vadd.f32 %v1453, %v1454
    %v1456 = vrot.slane %v1455, 2
    %v1457 = vadd.f32 %v1455, %v1456
    %v1458 = vrot.slane %v1457, 1
    %v1459 = vadd.f32 %v1457, %v1458
    %v1460 = vmul.f32 %v1459, %v1285
    %v1461 = vsub.f32 %v1090, %v1460
    %v1462 = vsub.f32 %v1093, %v1460
    %v1463 = vsub.f32 %v1098, %v1460
    %v1464 = vsub.f32 %v1101, %v1460
    %v1465 = vsub.f32 %v1106, %v1460
    %v1466 = vsub.f32 %v1109, %v1460
    %v1467 = vsub.f32 %v1114, %v1460
    %v1468 = vsub.f32 %v1117, %v1460
    %v1469 = vsub.f32 %v1122, %v1460
    %v1470 = vsub.f32 %v1125, %v1460
    %v1471 = vsub.f32 %v1130, %v1460
    %v1472 = vsub.f32 %v1133, %v1460
    %v1473 = vsub.f32 %v1138, %v1460
    %v1474 = vsub.f32 %v1141, %v1460
    %v1475 = vsub.f32 %v1146, %v1460
    %v1476 = vsub.f32 %v1149, %v1460
    %v1477 = vsub.f32 %v1154, %v1460
    %v1478 = vsub.f32 %v1157, %v1460
    %v1479 = vsub.f32 %v1162, %v1460
    %v1480 = vsub.f32 %v1165, %v1460
    %v1481 = vsub.f32 %v1170, %v1460
    %v1482 = vsub.f32 %v1173, %v1460
    %v1483 = vsub.f32 %v1178, %v1460
    %v1484 = vsub.f32 %v1181, %v1460
    %v1485 = vsub.f32 %v1186, %v1460
    %v1486 = vsub.f32 %v1189, %v1460
    %v1487 = vsub.f32 %v1194, %v1460
    %v1488 = vsub.f32 %v1197, %v1460
    %v1489 = vsub.f32 %v1202, %v1460
    %v1490 = vsub.f32 %v1205, %v1460
    %v1491 = vsub.f32 %v1210, %v1460
    %v1492 = vsub.f32 %v1213, %v1460
    %v1493 = vmul.f32 %v1461, %v1461
    %v1494 = vmul.f32 %v1462, %v1462
    %v1495 = vmul.f32 %v1463, %v1463
    %v1496 = vmul.f32 %v1464, %v1464
    %v1497 = vmul.f32 %v1465, %v1465
    %v1498 = vmul.f32 %v1466, %v1466
    %v1499 = vmul.f32 %v1467, %v1467
    %v1500 = vmul.f32 %v1468, %v1468
    %v1501 = vmul.f32 %v1469, %v1469
    %v1502 = vmul.f32 %v1470, %v1470
    %v1503 = vmul.f32 %v1471, %v1471
    %v1504 = vmul.f32 %v1472, %v1472
    %v1505 = vmul.f32 %v1473, %v1473
    %v1506 = vmul.f32 %v1474, %v1474
    %v1507 = vmul.f32 %v1475, %v1475
    %v1508 = vmul.f32 %v1476, %v1476
    %v1509 = vmul.f32 %v1477, %v1477
    %v1510 = vmul.f32 %v1478, %v1478
    %v1511 = vmul.f32 %v1479, %v1479
    %v1512 = vmul.f32 %v1480, %v1480
    %v1513 = vmul.f32 %v1481, %v1481
    %v1514 = vmul.f32 %v1482, %v1482
    %v1515 = vmul.f32 %v1483, %v1483
    %v1516 = vmul.f32 %v1484, %v1484
    %v1517 = vmul.f32 %v1485, %v1485
    %v1518 = vmul.f32 %v1486, %v1486
    %v1519 = vmul.f32 %v1487, %v1487
    %v1520 = vmul.f32 %v1488, %v1488
    %v1521 = vmul.f32 %v1489, %v1489
    %v1522 = vmul.f32 %v1490, %v1490
    %v1523 = vmul.f32 %v1491, %v1491
    %v1524 = vmul.f32 %v1492, %v1492
    %v1525 = vadd.f32 %v1493, %v1494
    %v1526 = vadd.f32 %v1525, %v1495
    %v1527 = vadd.f32 %v1526, %v1496
    %v1528 = vadd.f32 %v1527, %v1497
    %v1529 = vadd.f32 %v1528, %v1498
    %v1530 = vadd.f32 %v1529, %v1499
    %v1531 = vadd.f32 %v1530, %v1500
    %v1532 = vadd.f32 %v1531, %v1501
    %v1533 = vadd.f32 %v1532, %v1502
    %v1534 = vadd.f32 %v1533, %v1503
    %v1535 = vadd.f32 %v1534, %v1504
    %v1536 = vadd.f32 %v1535, %v1505
    %v1537 = vadd.f32 %v1536, %v1506
    %v1538 = vadd.f32 %v1537, %v1507
    %v1539 = vadd.f32 %v1538, %v1508
    %v1540 = vadd.f32 %v1539, %v1509
    %v1541 = vadd.f32 %v1540, %v1510
    %v1542 = vadd.f32 %v1541, %v1511
    %v1543 = vadd.f32 %v1542, %v1512
    %v1544 = vadd.f32 %v1543, %v1513
    %v1545 = vadd.f32 %v1544, %v1514
    %v1546 = vadd.f32 %v1545, %v1515
    %v1547 = vadd.f32 %v1546, %v1516
    %v1548 = vadd.f32 %v1547, %v1517
    %v1549 = vadd.f32 %v1548, %v1518
    %v1550 = vadd.f32 %v1549, %v1519
    %v1551 = vadd.f32 %v1550, %v1520
    %v1552 = vadd.f32 %v1551, %v1521
    %v1553 = vadd.f32 %v1552, %v1522
    %v1554 = vadd.f32 %v1553, %v1523
    %v1555 = vadd.f32 %v1554, %v1524
    %v1556 = vrot.slane %v1555, 4
    %v1557 = vadd.f32 %v1555, %v1556
    %v1558 = vrot.slane %v1557, 2
    %v1559 = vadd.f32 %v1557, %v1558
    %v1560 = vrot.slane %v1559, 1
    %v1561 = vadd.f32 %v1559, %v1560
    %v1562 = vmul.f32 %v1561, %v1285
    %v1563 = vadd.f32 %v1562, 1e-05
    %v1564 = vrsqrt.pop %v1563
    %v1565 = vmul.f32 %v1461, %v1564
    %v1566 = vmul.f32 %v1462, %v1564
    %v1567 = vmul.f32 %v1463, %v1564
    %v1568 = vmul.f32 %v1464, %v1564
    %v1569 = vmul.f32 %v1465, %v1564
    %v1570 = vmul.f32 %v1466, %v1564
    %v1571 = vmul.f32 %v1467, %v1564
    %v1572 = vmul.f32 %v1468, %v1564
    %v1573 = vmul.f32 %v1469, %v1564
    %v1574 = vmul.f32 %v1470, %v1564
    %v1575 = vmul.f32 %v1471, %v1564
    %v1576 = vmul.f32 %v1472, %v1564
    %v1577 = vmul.f32 %v1473, %v1564
    %v1578 = vmul.f32 %v1474, %v1564
    %v1579 = vmul.f32 %v1475, %v1564
    %v1580 = vmul.f32 %v1476, %v1564
    %v1581 = vmul.f32 %v1477, %v1564
    %v1582 = vmul.f32 %v1478, %v1564
    %v1583 = vmul.f32 %v1479, %v1564
    %v1584 = vmul.f32 %v1480, %v1564
    %v1585 = vmul.f32 %v1481, %v1564
    %v1586 = vmul.f32 %v1482, %v1564
    %v1587 = vmul.f32 %v1483, %v1564
    %v1588 = vmul.f32 %v1484, %v1564
    %v1589 = vmul.f32 %v1485, %v1564
    %v1590 = vmul.f32 %v1486, %v1564
    %v1591 = vmul.f32 %v1487, %v1564
    %v1592 = vmul.f32 %v1488, %v1564
    %v1593 = vmul.f32 %v1489, %v1564
    %v1594 = vmul.f32 %v1490, %v1564
    %v1595 = vmul.f32 %v1491, %v1564
    %v1596 = vmul.f32 %v1492, %v1564
    %v1597 = vadd.f32 %v1391, %v1565
    %v1598 = vadd.f32 %v1392, %v1566
    %v1599 = vadd.f32 %v1393, %v1567
    %v1600 = vadd.f32 %v1394, %v1568
    %v1601 = vadd.f32 %v1395, %v1569
    %v1602 = vadd.f32 %v1396, %v1570
    %v1603 = vadd.f32 %v1397, %v1571
    %v1604 = vadd.f32 %v1398, %v1572
    %v1605 = vadd.f32 %v1399, %v1573
    %v1606 = vadd.f32 %v1400, %v1574
    %v1607 = vadd.f32 %v1401, %v1575
    %v1608 = vadd.f32 %v1402, %v1576
    %v1609 = vadd.f32 %v1403, %v1577
    %v1610 = vadd.f32 %v1404, %v1578
    %v1611 = vadd.f32 %v1405, %v1579
    %v1612 = vadd.f32 %v1406, %v1580
    %v1613 = vadd.f32 %v1407, %v1581
    %v1614 = vadd.f32 %v1408, %v1582
    %v1615 = vadd.f32 %v1409, %v1583
    %v1616 = vadd.f32 %v1410, %v1584
    %v1617 = vadd.f32 %v1411, %v1585
    %v1618 = vadd.f32 %v1412, %v1586
    %v1619 = vadd.f32 %v1413, %v1587
    %v1620 = vadd.f32 %v1414, %v1588
    %v1621 = vadd.f32 %v1415, %v1589
    %v1622 = vadd.f32 %v1416, %v1590
    %v1623 = vadd.f32 %v1417, %v1591
    %v1624 = vadd.f32 %v1418, %v1592
    %v1625 = vadd.f32 %v1419, %v1593
    %v1626 = vadd.f32 %v1420, %v1594
    %v1627 = vadd.f32 %v1421, %v1595
    %v1628 = vadd.f32 %v1422, %v1596
    %1629 = vst [vmem:[#allocation7] sm:$0xff] %v1597
    %1630 = vst [vmem:[#allocation7 + $0x8] sm:$0xff] %v1598
    %1631 = vst [vmem:[#allocation7 + $0x10] sm:$0xff] %v1599
    %1632 = vst [vmem:[#allocation7 + $0x18] sm:$0xff] %v1600
    %1633 = vst [vmem:[#allocation7 + $0x20] sm:$0xff] %v1601
    %1634 = vst [vmem:[#allocation7 + $0x28] sm:$0xff] %v1602
    %1635 = vst [vmem:[#allocation7 + $0x30] sm:$0xff] %v1603
    %1636 = vst [vmem:[#allocation7 + $0x38] sm:$0xff] %v1604
    %1637 = vst [vmem:[#allocation7 + $0x40] sm:$0xff] %v1605
    %1638 = vst [vmem:[#allocation7 + $0x48] sm:$0xff] %v1606
    %1639 = vst [vmem:[#allocation7 + $0x50] sm:$0xff] %v1607
    %1640 = vst [vmem:[#allocation7 + $0x58] sm:$0xff] %v1608
    %1641 = vst [vmem:[#allocation7 + $0x60] sm:$0xff] %v1609
    %1642 = vst [vmem:[#allocation7 + $0x68] sm:$0xff] %v1610
    %1643 = vst [vmem:[#allocation7 + $0x70] sm:$0xff] %v1611
    %1644 = vst [vmem:[#allocation7 + $0x78] sm:$0xff] %v1612
    %1645 = vst [vmem:[#allocation7 + $0x80] sm:$0xff] %v1613
    %1646 = vst [vmem:[#allocation7 + $0x88] sm:$0xff] %v1614
    %1647 = vst [vmem:[#allocation7 + $0x90] sm:$0xff] %v1615
    %1648 = vst [vmem:[#allocation7 + $0x98] sm:$0xff] %v1616
    %1649 = vst [vmem:[#allocation7 + $0xa0] sm:$0xff] %v1617
    %1650 = vst [vmem:[#allocation7 + $0xa8] sm:$0xff] %v1618
    %1651 = vst [vmem:[#allocation7 + $0xb0] sm:$0xff] %v1619
    %1652 = vst [vmem:[#allocation7 + $0xb8] sm:$0xff] %v1620
    %1653 = vst [vmem:[#allocation7 + $0xc0] sm:$0xff] %v1621
    %1654 = vst [vmem:[#allocation7 + $0xc8] sm:$0xff] %v1622
    %1655 = vst [vmem:[#allocation7 + $0xd0] sm:$0xff] %v1623
    %1656 = vst [vmem:[#allocation7 + $0xd8] sm:$0xff] %v1624
    %1657 = vst [vmem:[#allocation7 + $0xe0] sm:$0xff] %v1625
    %1658 = vst [vmem:[#allocation7 + $0xe8] sm:$0xff] %v1626
    %1659 = vst [vmem:[#allocation7 + $0xf0] sm:$0xff] %v1627
    %1660 = vst [vmem:[#allocation7 + $0xf8] sm:$0xff] %v1628
    // Predicated region
    $region26: #{tpu_custom_call.1} parent=1 // pred_check
      _
    $region27: #{tpu_custom_call.1} parent=1 // pred_check_branch
      %1662 = sbr.rel (0) target = $region29
    $region28: #{tpu_custom_call.1} parent=1 // pred_region
      %s1664 = ssub.s32 4096, 4096
      %1665 = vsyncadd [#allocation4], %s1664
      %s1666 = sshll.u32 [#allocation7], 4
      %s1667 = int_to_ptr.vmem [resolvable:$true] %s1666
      %1672 = dma.vmem_to_hbm [thread:$0]  %s1667, 4096, %s4, [#allocation4], 128, 128, 8
    $region29: #{tpu_custom_call.1} parent=1 // pred_fallthru
      _
    // Predicated region
    $region30: #{tpu_custom_call.1} parent=1 // pred_check
      _
    $region31: #{tpu_custom_call.1} parent=1 // pred_check_branch
      %1674 = sbr.rel (0) target = $region33
    $region32: #{tpu_custom_call.1} parent=1 // pred_region
      %1675 = dma.done [#allocation4], 4096
    $region33: #{tpu_custom_call.1} parent=1 // pred_fallthru
      _
    %1676 = vsyncpa [#allocation3], 1
    %1677 = vsyncpa [#allocation6], 1
    %1678 = vsyncpa [#allocation4], 1

</llo_original>
